<compile_context>
chip_gen: v5e
topology: v5e:2x2
jax: 0.10.0
libtpu: 0.0.40
codegen_flags: <defaults>
</compile_context>

<pallas_src>
import functools

import jax
import jax.numpy as jnp
from jax import lax
from jax.experimental import pallas as pl
from jax.experimental.pallas import tpu as pltpu

LN_EPS = 1e-12                       # BertLayerNorm eps


def _vmem_limit_bytes():
    """Generation-aware scoped-VMEM limit (leave headroom for Mosaic scratch)."""
    try:
        cap = pltpu.get_tpu_info().vmem_capacity_bytes
    except Exception:
        cap = 64 * 1024 * 1024       # conservative (v7x-sized) fallback
    return int(min(100 * 1024 * 1024, cap * 0.85))


# ------------------------- in-kernel helpers -------------------------

def _layernorm(x, gamma, beta):
    # matches BertLayerNorm: u = mean, s = mean((x-u)^2), (x-u)/sqrt(s+eps)*g + b
    u = jnp.mean(x, axis=-1, keepdims=True)
    s = jnp.mean((x - u) ** 2, axis=-1, keepdims=True)
    return gamma * ((x - u) * lax.rsqrt(s + LN_EPS)) + beta


def _gelu(x):
    # tanh approximation of BERT's erf-gelu (EUP tanh)
    c = 0.7978845608028654  # sqrt(2/pi)
    return 0.5 * x * (1.0 + jnp.tanh(c * (x + 0.044715 * x * x * x)))


# ------------------------- fused BERT kernel -------------------------

def bert_kernel(num_heads, bt, ffn_chunk,
                wg_ref, pe_ref, te_ref, eg_ref, eb_ref, m_ref,
                wqkv_ref, bqkv_ref, wo_ref, bo_ref, g1_ref, be1_ref,
                wi_ref, bi_ref, w2_ref, b2_ref, g2_ref, be2_ref,
                o_ref, h_ref, ctx_ref):
    """grid = (batch_block, layer); one encoder layer for Bt batch rows/step."""
    li = pl.program_id(1)
    L, H = pe_ref.shape
    dh = H // num_heads
    M = bt * L                          # Bt batch rows folded into matmul M dim
    scale = 1.0 / float(dh) ** 0.5

    # Layer 0: fused embeddings (word + pos + token-type-0) + LayerNorm,
    # written straight into the residual-stream carry (no HBM round trip).
    @pl.when(li == 0)
    def _():
        x = wg_ref[...] + pe_ref[...] + te_ref[...]          # (Bt, L, H) f32
        h_ref[...] = _layernorm(x, eg_ref[...], eb_ref[...]).reshape(M, H)

    h = h_ref[...]                      # (M, H) f32 residual stream
    h_bf = h.astype(jnp.bfloat16)

    # ---- fused QKV projection: one (M,H)x(H,3H) matmul, f32 accumulation ----
    qkv = (jnp.dot(h_bf, wqkv_ref[0], preferred_element_type=jnp.float32)
           + bqkv_ref[0]).astype(jnp.bfloat16)               # (M, 3H) bf16

    # ---- attention per (batch row, head) ----
    # Each head's context is stored directly into the bf16 ctx scratch at its
    # static lane slice, so the head body keeps only one (L,L) score tile live
    # and the output projection becomes a single K=H matmul below.
    for b in range(bt):
        r0 = b * L
        # mask broadcast hoisted out of the head loop (no per-head re-broadcast)
        mask_b = jnp.broadcast_to(m_ref[b], (L, L))          # (L, L) additive
        for hd in range(num_heads):
            lo = hd * dh
            qh = qkv[r0:r0 + L, lo:lo + dh]
            kh = qkv[r0:r0 + L, H + lo:H + lo + dh]
            vh = qkv[r0:r0 + L, 2 * H + lo:2 * H + lo + dh]
            # q @ k^T without materializing a transpose
            s = lax.dot_general(qh, kh, (((1,), (1,)), ((), ())),
                                preferred_element_type=jnp.float32) * scale
            s = s + mask_b
            s = s - jnp.max(s, axis=-1, keepdims=True)
            p = jnp.exp(s)
            p = p * pl.reciprocal(jnp.sum(p, axis=-1, keepdims=True),
                                  approx=True)
            ctx = jnp.dot(p.astype(jnp.bfloat16), vh,
                          preferred_element_type=jnp.float32)           # (L, dh)
            ctx_ref[r0:r0 + L, lo:lo + dh] = ctx.astype(jnp.bfloat16)

    # single output projection, K = H (full-depth MXU pass)
    attn = (jnp.dot(ctx_ref[...], wo_ref[0], preferred_element_type=jnp.float32)
            + bo_ref[0])

    h1 = _layernorm(attn + h, g1_ref[0], be1_ref[0])          # f32
    h1_bf = h1.astype(jnp.bfloat16)

    # ---- FFN, chunked over the intermediate dim (bounds live (M, chunk)) ----
    inter_dim = wi_ref.shape[-1]
    ffn = jnp.zeros((M, H), jnp.float32)
    c0 = 0
    while c0 < inter_dim:
        c1 = min(inter_dim, c0 + ffn_chunk)
        inter = (jnp.dot(h1_bf, wi_ref[0, :, c0:c1],
                         preferred_element_type=jnp.float32)
                 + bi_ref[0, :, c0:c1])
        inter = _gelu(inter).astype(jnp.bfloat16)
        ffn = ffn + jnp.dot(inter, w2_ref[0, c0:c1, :],
                            preferred_element_type=jnp.float32)
        c0 = c1
    ffn = ffn + b2_ref[0]

    h2 = _layernorm(ffn + h1, g2_ref[0], be2_ref[0])
    h_ref[...] = h2                        # carry to next layer

    # Only the requested encoder layer's output leaves the kernel.
    @pl.when(li == pl.num_programs(1) - 1)
    def _():
        o_ref[...] = h2.reshape(bt, L, H)


# ------------------------- wrapper (pallas_call) -------------------------

def bert_encoder_forward(word_g, pos_emb, type0, emb_g, emb_b, mask_add,
                         stacked, enc_num, num_heads, bt):
    """Embeddings + enc_num encoder layers in ONE pallas_call.

    grid = (B // Bt, enc_num): batch axis "parallel" (megacore), layer axis
    "arbitrary" with the residual stream carried in a VMEM scratch; per-layer
    weight slabs are pipelined across the layer axis and amortized over Bt
    batch rows per step.
    """
    B, L, H = word_g.shape
    inter_dim = stacked["wi"].shape[-1]
    vmem_limit = _vmem_limit_bytes()
    # bigger FFN chunks when VMEM is roomy (v5e/v6e 128 MiB); 512 on v7x-sized VMEM
    ffn_chunk = min(inter_dim, 1024 if vmem_limit >= 96 * 1024 * 1024 else 512)

    def wspec(d1, d2):
        # weight slab of layer `e`; pipelined (prefetched) across the layer axis
        return pl.BlockSpec((1, d1, d2), lambda b, e: (e, 0, 0))

    in_specs = [
        pl.BlockSpec((bt, L, H), lambda b, e: (b, 0, 0)),   # gathered word emb
        pl.BlockSpec((L, H), lambda b, e: (0, 0)),          # position emb
        pl.BlockSpec((1, H), lambda b, e: (0, 0)),          # token-type-0 emb
        pl.BlockSpec((1, H), lambda b, e: (0, 0)),          # emb LN gamma
        pl.BlockSpec((1, H), lambda b, e: (0, 0)),          # emb LN beta
        pl.BlockSpec((bt, 1, L), lambda b, e: (b, 0, 0)),   # additive attn mask
        wspec(H, 3 * H), wspec(1, 3 * H),   # Wqkv, bqkv (fused)
        wspec(H, H), wspec(1, H),           # Wo, bo
        wspec(1, H), wspec(1, H),           # LN1 g, b
        wspec(H, inter_dim), wspec(1, inter_dim),   # Wi, bi
        wspec(inter_dim, H), wspec(1, H),   # W2, b2
        wspec(1, H), wspec(1, H),           # LN2 g, b
    ]
    kernel = functools.partial(bert_kernel, num_heads, bt, ffn_chunk)
    return pl.pallas_call(
        kernel,
        out_shape=jax.ShapeDtypeStruct((B, L, H), jnp.float32),
        grid=(B // bt, enc_num),
        in_specs=in_specs,
        out_specs=pl.BlockSpec((bt, L, H), lambda b, e: (b, 0, 0)),
        scratch_shapes=[
            pltpu.VMEM((bt * L, H), jnp.float32),    # residual-stream carry
            pltpu.VMEM((bt * L, H), jnp.bfloat16),   # per-head context assembly
        ],
        compiler_params=pltpu.CompilerParams(
            dimension_semantics=("parallel", "arbitrary"),
            vmem_limit_bytes=vmem_limit),
    )(word_g, pos_emb, type0, emb_g, emb_b, mask_add,
      stacked["wqkv"], stacked["bqkv"], stacked["wo"], stacked["bo"],
      stacked["ln1_g"], stacked["ln1_b"],
      stacked["wi"], stacked["bi"], stacked["w2"], stacked["b2"],
      stacked["ln2_g"], stacked["ln2_b"])


# ------------------------- parameter construction -------------------------

def init_params(key, vocab, max_pos, hidden, inter, num_layers, std=0.02):
    keys = jax.random.split(key, 7)
    E = num_layers

    def normal(k, shape, dtype=jnp.float32):
        return (std * jax.random.normal(k, shape, jnp.float32)).astype(dtype)

    return {
        "word_emb": normal(keys[0], (vocab, hidden)),
        "pos_emb": normal(keys[1], (max_pos, hidden)),
        "type_emb": normal(keys[2], (2, hidden)),
        "emb_ln_g": jnp.ones((1, hidden), jnp.float32),
        "emb_ln_b": jnp.zeros((1, hidden), jnp.float32),
        # All encoder layers stacked with a leading layer axis; matmul weights
        # bf16 in (in, out) storage (torch weight transposed).  Wq/Wk/Wv are
        # fused along the output dim; real checkpoints: concat(Wq.T,Wk.T,Wv.T).
        "layers": {
            "wqkv": normal(keys[3], (E, hidden, 3 * hidden), jnp.bfloat16),
            "bqkv": jnp.zeros((E, 1, 3 * hidden), jnp.float32),
            "wo": normal(keys[4], (E, hidden, hidden), jnp.bfloat16),
            "bo": jnp.zeros((E, 1, hidden), jnp.float32),
            "ln1_g": jnp.ones((E, 1, hidden), jnp.float32),
            "ln1_b": jnp.zeros((E, 1, hidden), jnp.float32),
            "wi": normal(keys[5], (E, hidden, inter), jnp.bfloat16),
            "bi": jnp.zeros((E, 1, inter), jnp.float32),
            "w2": normal(keys[6], (E, inter, hidden), jnp.bfloat16),
            "b2": jnp.zeros((E, 1, hidden), jnp.float32),
            "ln2_g": jnp.ones((E, 1, hidden), jnp.float32),
            "ln2_b": jnp.zeros((E, 1, hidden), jnp.float32),
        },
    }


# ------------------------- BERT module forward -------------------------

def _pick_batch_block(B, target=4):
    """Largest Bt <= target dividing B, while keeping >=2 parallel grid points
    when possible (so the batch axis can still shard across v7x's two TCs)."""
    bt = max(1, min(target, B))
    while B % bt != 0:
        bt -= 1
    while bt > 1 and B // bt < 2:
        bt //= 2
        while B % bt != 0:
            bt -= 1
    return bt


def bert_forward(params, input_ids, attn_mask, enc_num, num_heads):
    """Mirrors BERT.forward.  Returns (xs, inverted_mask)."""
    B, L = input_ids.shape
    out_mask = jnp.logical_not(attn_mask.astype(jnp.bool_))   # mask = ~mask

    if enc_num <= 0:
        # enc_num == 0 path: raw word embeddings (no LN / encoder)
        xs = jnp.take(params["word_emb"], input_ids, axis=0)
        return xs, out_mask

    # glue: embedding table gather (data-dependent HBM lookup) stays in XLA
    word_g = jnp.take(params["word_emb"], input_ids, axis=0)          # (B, L, H)
    pos_e = params["pos_emb"][:L]                                     # (L, H)
    type0 = params["type_emb"][0:1]                   # token_type_ids=None => 0

    # extended attention mask: (1 - mask) * -10000, broadcast over heads/queries
    mask_add = ((1.0 - attn_mask.astype(jnp.float32)) * -10000.0).reshape(B, 1, L)

    # layers beyond enc_num-1 don't affect the output => run only enc_num layers
    stacked = {k: v[:enc_num] for k, v in params["layers"].items()}
    bt = _pick_batch_block(B)
    xs = bert_encoder_forward(word_g, pos_e, type0,
                              params["emb_ln_g"], params["emb_ln_b"],
                              mask_add, stacked, enc_num, num_heads, bt)
    return xs, out_mask


# ------------------------- demo -------------------------

if __name__ == "__main__":
    # SMALL demo shapes.  (Production configs should keep H / head_dim
    # multiples of 128 / 8 for lane-dense tiles; BERT-base H=768, dh=64 is OK.)
    B, L = 4, 8          # batch, sequence length  (Bt=2 -> 2 parallel grid pts)
    H = 32               # hidden size
    NUM_HEADS = 4
    INTER = 64           # intermediate size
    VOCAB = 64
    MAX_POS = 16
    ENC_NUM = 2          # take output of encoder layer ENC_NUM-1
    NUM_LAYERS = 2

    key = jax.random.PRNGKey(0)
    k_ids, k_params = jax.random.split(key)

    input_ids = jax.random.randint(k_ids, (B, L), 0, VOCAB, dtype=jnp.int32)
    # attention mask with varying padding
    attn_mask = jnp.array([[1] * L,
                           [1] * (L - 3) + [0] * 3,
                           [1] * (L - 1) + [0] * 1,
                           [1] * (L - 5) + [0] * 5], dtype=jnp.int32)

    params = init_params(k_params, VOCAB, MAX_POS, H, INTER, NUM_LAYERS)

    xs, out_mask = bert_forward(params, input_ids, attn_mask, ENC_NUM, NUM_HEADS)
    xs = jax.block_until_ready(xs)
    out_mask = jax.block_until_ready(out_mask)

    assert xs.shape == (B, L, H) and xs.dtype == jnp.float32
    assert out_mask.shape == (B, L) and out_mask.dtype == jnp.bool_
    assert bool(jnp.all(jnp.isfinite(xs)))
    print("KERNEL_OK")
</pallas_src>

<mosaic_0001>
module attributes {stable_mosaic.version = 11 : i64} {
  func.func @bert_kernel(%arg0: i32, %arg1: i32, %arg2: memref<2x8x32xf32, #tpu.memory_space<vmem>>, %arg3: memref<8x32xf32, #tpu.memory_space<vmem>>, %arg4: memref<1x32xf32, #tpu.memory_space<vmem>>, %arg5: memref<1x32xf32, #tpu.memory_space<vmem>>, %arg6: memref<1x32xf32, #tpu.memory_space<vmem>>, %arg7: memref<2x1x8xf32, #tpu.memory_space<vmem>>, %arg8: memref<1x32x96xbf16, #tpu.memory_space<vmem>>, %arg9: memref<1x1x96xf32, #tpu.memory_space<vmem>>, %arg10: memref<1x32x32xbf16, #tpu.memory_space<vmem>>, %arg11: memref<1x1x32xf32, #tpu.memory_space<vmem>>, %arg12: memref<1x1x32xf32, #tpu.memory_space<vmem>>, %arg13: memref<1x1x32xf32, #tpu.memory_space<vmem>>, %arg14: memref<1x32x64xbf16, #tpu.memory_space<vmem>>, %arg15: memref<1x1x64xf32, #tpu.memory_space<vmem>>, %arg16: memref<1x64x32xbf16, #tpu.memory_space<vmem>>, %arg17: memref<1x1x32xf32, #tpu.memory_space<vmem>>, %arg18: memref<1x1x32xf32, #tpu.memory_space<vmem>>, %arg19: memref<1x1x32xf32, #tpu.memory_space<vmem>>, %arg20: memref<2x8x32xf32, #tpu.memory_space<vmem>>, %arg21: memref<16x32xf32, #tpu.memory_space<vmem>>, %arg22: memref<16x32xbf16, #tpu.memory_space<vmem>>) attributes {dimension_semantics = [#tpu.dimension_semantics<parallel>, #tpu.dimension_semantics<arbitrary>], iteration_bounds = array<i64: 2, 2>, scalar_prefetch = 0 : i64, scratch_operands = 2 : i64, tpu.core_type = #tpu.core_type<tc>, window_params = [{transform_indices = @transform_0, window_bounds = array<i64: 2, 8, 32>}, {pipeline_mode = #tpu.pipeline_mode<synchronous>, transform_indices = @transform_1, window_bounds = array<i64: 8, 32>}, {pipeline_mode = #tpu.pipeline_mode<synchronous>, transform_indices = @transform_2, window_bounds = array<i64: 1, 32>}, {pipeline_mode = #tpu.pipeline_mode<synchronous>, transform_indices = @transform_3, window_bounds = array<i64: 1, 32>}, {pipeline_mode = #tpu.pipeline_mode<synchronous>, transform_indices = @transform_4, window_bounds = array<i64: 1, 32>}, {transform_indices = @transform_5, window_bounds = array<i64: 2, 1, 8>}, {transform_indices = @transform_6, window_bounds = array<i64: 1, 32, 96>}, {transform_indices = @transform_7, window_bounds = array<i64: 1, 1, 96>}, {transform_indices = @transform_8, window_bounds = array<i64: 1, 32, 32>}, {transform_indices = @transform_9, window_bounds = array<i64: 1, 1, 32>}, {transform_indices = @transform_10, window_bounds = array<i64: 1, 1, 32>}, {transform_indices = @transform_11, window_bounds = array<i64: 1, 1, 32>}, {transform_indices = @transform_12, window_bounds = array<i64: 1, 32, 64>}, {transform_indices = @transform_13, window_bounds = array<i64: 1, 1, 64>}, {transform_indices = @transform_14, window_bounds = array<i64: 1, 64, 32>}, {transform_indices = @transform_15, window_bounds = array<i64: 1, 1, 32>}, {transform_indices = @transform_16, window_bounds = array<i64: 1, 1, 32>}, {transform_indices = @transform_17, window_bounds = array<i64: 1, 1, 32>}, {transform_indices = @transform_18, window_bounds = array<i64: 2, 8, 32>}]} {
    %c0_i32 = arith.constant 0 : i32
    %0 = arith.cmpi eq, %arg1, %c0_i32 : i32
    %1 = arith.extui %0 : i1 to i32
    %c0_i32_0 = arith.constant 0 : i32
    %2 = arith.cmpi ne, %1, %c0_i32_0 : i32
    scf.if %2 {
      %c0_119 = arith.constant 0 : index
      %c0_120 = arith.constant 0 : index
      %c0_121 = arith.constant 0 : index
      %286 = vector.load %arg2[%c0_119, %c0_120, %c0_121] : memref<2x8x32xf32, #tpu.memory_space<vmem>>, vector<2x8x32xf32>
      %c0_122 = arith.constant 0 : index
      %c0_123 = arith.constant 0 : index
      %287 = vector.load %arg3[%c0_122, %c0_123] : memref<8x32xf32, #tpu.memory_space<vmem>>, vector<8x32xf32>
      %288 = vector.shape_cast %287 : vector<8x32xf32> to vector<1x8x32xf32>
      %289 = vector.broadcast %288 : vector<1x8x32xf32> to vector<2x8x32xf32>
      %290 = arith.addf %286, %289 : vector<2x8x32xf32>
      %c0_124 = arith.constant 0 : index
      %c0_125 = arith.constant 0 : index
      %291 = vector.load %arg4[%c0_124, %c0_125] : memref<1x32xf32, #tpu.memory_space<vmem>>, vector<1x32xf32>
      %292 = vector.shape_cast %291 : vector<1x32xf32> to vector<1x1x32xf32>
      %293 = vector.broadcast %292 : vector<1x1x32xf32> to vector<2x8x32xf32>
      %294 = arith.addf %290, %293 : vector<2x8x32xf32>
      %c0_126 = arith.constant 0 : index
      %c0_127 = arith.constant 0 : index
      %295 = vector.load %arg5[%c0_126, %c0_127] : memref<1x32xf32, #tpu.memory_space<vmem>>, vector<1x32xf32>
      %c0_128 = arith.constant 0 : index
      %c0_129 = arith.constant 0 : index
      %296 = vector.load %arg6[%c0_128, %c0_129] : memref<1x32xf32, #tpu.memory_space<vmem>>, vector<1x32xf32>
      %cst_130 = arith.constant dense<0.000000e+00> : vector<2x8xf32>
      %297 = vector.multi_reduction <add>, %294, %cst_130 [2] : vector<2x8x32xf32> to vector<2x8xf32>
      %298 = vector.shape_cast %297 : vector<2x8xf32> to vector<2x8x1xf32>
      %cst_131 = arith.constant 3.200000e+01 : f32
      %299 = vector.broadcast %cst_131 : f32 to vector<2x8x1xf32>
      %300 = arith.divf %298, %299 : vector<2x8x1xf32>
      %301 = vector.broadcast %300 : vector<2x8x1xf32> to vector<2x8x32xf32>
      %302 = arith.subf %294, %301 : vector<2x8x32xf32>
      %303 = arith.mulf %302, %302 : vector<2x8x32xf32>
      %cst_132 = arith.constant dense<0.000000e+00> : vector<2x8xf32>
      %304 = vector.multi_reduction <add>, %303, %cst_132 [2] : vector<2x8x32xf32> to vector<2x8xf32>
      %305 = vector.shape_cast %304 : vector<2x8xf32> to vector<2x8x1xf32>
      %cst_133 = arith.constant 3.200000e+01 : f32
      %306 = vector.broadcast %cst_133 : f32 to vector<2x8x1xf32>
      %307 = arith.divf %305, %306 : vector<2x8x1xf32>
      %308 = vector.broadcast %300 : vector<2x8x1xf32> to vector<2x8x32xf32>
      %309 = arith.subf %294, %308 : vector<2x8x32xf32>
      %cst_134 = arith.constant 9.99999996E-13 : f32
      %310 = vector.broadcast %cst_134 : f32 to vector<2x8x1xf32>
      %311 = arith.addf %307, %310 : vector<2x8x1xf32>
      %312 = math.rsqrt %311 : vector<2x8x1xf32>
      %313 = vector.broadcast %312 : vector<2x8x1xf32> to vector<2x8x32xf32>
      %314 = arith.mulf %309, %313 : vector<2x8x32xf32>
      %315 = vector.shape_cast %295 : vector<1x32xf32> to vector<1x1x32xf32>
      %316 = vector.broadcast %315 : vector<1x1x32xf32> to vector<2x8x32xf32>
      %317 = arith.mulf %316, %314 : vector<2x8x32xf32>
      %318 = vector.shape_cast %296 : vector<1x32xf32> to vector<1x1x32xf32>
      %319 = vector.broadcast %318 : vector<1x1x32xf32> to vector<2x8x32xf32>
      %320 = arith.addf %317, %319 : vector<2x8x32xf32>
      %321 = vector.shape_cast %320 : vector<2x8x32xf32> to vector<16x32xf32>
      %c0_135 = arith.constant 0 : index
      %c0_136 = arith.constant 0 : index
      %322 = vector.load %arg21[%c0_135, %c0_136] : memref<16x32xf32, #tpu.memory_space<vmem>>, vector<16x32xf32>
      tpu.vector_store %arg21[%c0_135, %c0_136], %321 {strides = array<i32>} : memref<16x32xf32, #tpu.memory_space<vmem>>, vector<16x32xf32>,
    } else {
    }
    %c0 = arith.constant 0 : index
    %c0_1 = arith.constant 0 : index
    %3 = vector.load %arg21[%c0, %c0_1] : memref<16x32xf32, #tpu.memory_space<vmem>>, vector<16x32xf32>
    %4 = arith.truncf %3 : vector<16x32xf32> to vector<16x32xbf16>
    %c0_2 = arith.constant 0 : index
    %c0_3 = arith.constant 0 : index
    %c0_4 = arith.constant 0 : index
    %5 = vector.load %arg8[%c0_2, %c0_3, %c0_4] : memref<1x32x96xbf16, #tpu.memory_space<vmem>>, vector<1x32x96xbf16>
    %6 = vector.shape_cast %5 : vector<1x32x96xbf16> to vector<32x96xbf16>
    %cst = arith.constant dense<0.000000e+00> : vector<16x96xf32>
    %7 = tpu.matmul %4, %6, %cst {dimension_numbers = #tpu.dot_dimension_numbers<[1], [0], [0], [1], [0, 0, 1, 1], [], []>} : vector<16x32xbf16>, vector<32x96xbf16>, vector<16x96xf32> -> vector<16x96xf32>
    %c0_5 = arith.constant 0 : index
    %c0_6 = arith.constant 0 : index
    %c0_7 = arith.constant 0 : index
    %8 = vector.load %arg9[%c0_5, %c0_6, %c0_7] : memref<1x1x96xf32, #tpu.memory_space<vmem>>, vector<1x1x96xf32>
    %9 = vector.shape_cast %8 : vector<1x1x96xf32> to vector<1x96xf32>
    %10 = vector.broadcast %9 : vector<1x96xf32> to vector<16x96xf32>
    %11 = arith.addf %7, %10 : vector<16x96xf32>
    %12 = arith.truncf %11 : vector<16x96xf32> to vector<16x96xbf16>
    %c0_8 = arith.constant 0 : index
    %c0_9 = arith.constant 0 : index
    %c0_10 = arith.constant 0 : index
    %13 = vector.load %arg7[%c0_8, %c0_9, %c0_10] : memref<2x1x8xf32, #tpu.memory_space<vmem>>, vector<1x1x8xf32>
    %14 = vector.shape_cast %13 : vector<1x1x8xf32> to vector<1x8xf32>
    %15 = vector.shape_cast %14 : vector<1x8xf32> to vector<1x8xf32>
    %16 = vector.broadcast %15 : vector<1x8xf32> to vector<8x8xf32>
    %17 = vector.extract_strided_slice %12 {offsets = [0, 0], sizes = [8, 8], strides = [1, 1]} : vector<16x96xbf16> to vector<8x8xbf16>
    %18 = vector.extract_strided_slice %12 {offsets = [0, 32], sizes = [8, 8], strides = [1, 1]} : vector<16x96xbf16> to vector<8x8xbf16>
    %19 = vector.extract_strided_slice %12 {offsets = [0, 64], sizes = [8, 8], strides = [1, 1]} : vector<16x96xbf16> to vector<8x8xbf16>
    %cst_11 = arith.constant dense<0.000000e+00> : vector<8x8xf32>
    %20 = tpu.matmul %17, %18, %cst_11 {dimension_numbers = #tpu.dot_dimension_numbers<[1], [1], [0], [0], [0, 0, 1, 0], [], []>} : vector<8x8xbf16>, vector<8x8xbf16>, vector<8x8xf32> -> vector<8x8xf32>
    %cst_12 = arith.constant 0.353553385 : f32
    %21 = vector.broadcast %cst_12 : f32 to vector<8x8xf32>
    %22 = arith.mulf %20, %21 : vector<8x8xf32>
    %23 = arith.addf %22, %16 : vector<8x8xf32>
    %cst_13 = arith.constant dense<0xFF800000> : vector<8xf32>
    %24 = vector.multi_reduction <maximumf>, %23, %cst_13 [1] : vector<8x8xf32> to vector<8xf32>
    %25 = vector.shape_cast %24 : vector<8xf32> to vector<8x1xf32>
    %26 = vector.broadcast %25 : vector<8x1xf32> to vector<8x8xf32>
    %27 = arith.subf %23, %26 : vector<8x8xf32>
    %28 = math.exp %27 : vector<8x8xf32>
    %cst_14 = arith.constant dense<0.000000e+00> : vector<8xf32>
    %29 = vector.multi_reduction <add>, %28, %cst_14 [1] : vector<8x8xf32> to vector<8xf32>
    %30 = vector.shape_cast %29 : vector<8xf32> to vector<8x1xf32>
    %31 = tpu.reciprocal %30 {approx = true} : vector<8x1xf32> -> vector<8x1xf32>
    %32 = vector.broadcast %31 : vector<8x1xf32> to vector<8x8xf32>
    %33 = arith.mulf %28, %32 : vector<8x8xf32>
    %34 = arith.truncf %33 : vector<8x8xf32> to vector<8x8xbf16>
    %cst_15 = arith.constant dense<0.000000e+00> : vector<8x8xf32>
    %35 = tpu.matmul %34, %19, %cst_15 {dimension_numbers = #tpu.dot_dimension_numbers<[1], [0], [0], [1], [0, 0, 1, 1], [], []>} : vector<8x8xbf16>, vector<8x8xbf16>, vector<8x8xf32> -> vector<8x8xf32>
    %36 = arith.truncf %35 : vector<8x8xf32> to vector<8x8xbf16>
    %c0_16 = arith.constant 0 : index
    %c0_17 = arith.constant 0 : index
    %37 = vector.load %arg22[%c0_16, %c0_17] : memref<16x32xbf16, #tpu.memory_space<vmem>>, vector<8x8xbf16>
    tpu.vector_store %arg22[%c0_16, %c0_17], %36 {strides = array<i32>} : memref<16x32xbf16, #tpu.memory_space<vmem>>, vector<8x8xbf16>,
    %38 = vector.extract_strided_slice %12 {offsets = [0, 8], sizes = [8, 8], strides = [1, 1]} : vector<16x96xbf16> to vector<8x8xbf16>
    %39 = vector.extract_strided_slice %12 {offsets = [0, 40], sizes = [8, 8], strides = [1, 1]} : vector<16x96xbf16> to vector<8x8xbf16>
    %40 = vector.extract_strided_slice %12 {offsets = [0, 72], sizes = [8, 8], strides = [1, 1]} : vector<16x96xbf16> to vector<8x8xbf16>
    %cst_18 = arith.constant dense<0.000000e+00> : vector<8x8xf32>
    %41 = tpu.matmul %38, %39, %cst_18 {dimension_numbers = #tpu.dot_dimension_numbers<[1], [1], [0], [0], [0, 0, 1, 0], [], []>} : vector<8x8xbf16>, vector<8x8xbf16>, vector<8x8xf32> -> vector<8x8xf32>
    %cst_19 = arith.constant 0.353553385 : f32
    %42 = vector.broadcast %cst_19 : f32 to vector<8x8xf32>
    %43 = arith.mulf %41, %42 : vector<8x8xf32>
    %44 = arith.addf %43, %16 : vector<8x8xf32>
    %cst_20 = arith.constant dense<0xFF800000> : vector<8xf32>
    %45 = vector.multi_reduction <maximumf>, %44, %cst_20 [1] : vector<8x8xf32> to vector<8xf32>
    %46 = vector.shape_cast %45 : vector<8xf32> to vector<8x1xf32>
    %47 = vector.broadcast %46 : vector<8x1xf32> to vector<8x8xf32>
    %48 = arith.subf %44, %47 : vector<8x8xf32>
    %49 = math.exp %48 : vector<8x8xf32>
    %cst_21 = arith.constant dense<0.000000e+00> : vector<8xf32>
    %50 = vector.multi_reduction <add>, %49, %cst_21 [1] : vector<8x8xf32> to vector<8xf32>
    %51 = vector.shape_cast %50 : vector<8xf32> to vector<8x1xf32>
    %52 = tpu.reciprocal %51 {approx = true} : vector<8x1xf32> -> vector<8x1xf32>
    %53 = vector.broadcast %52 : vector<8x1xf32> to vector<8x8xf32>
    %54 = arith.mulf %49, %53 : vector<8x8xf32>
    %55 = arith.truncf %54 : vector<8x8xf32> to vector<8x8xbf16>
    %cst_22 = arith.constant dense<0.000000e+00> : vector<8x8xf32>
    %56 = tpu.matmul %55, %40, %cst_22 {dimension_numbers = #tpu.dot_dimension_numbers<[1], [0], [0], [1], [0, 0, 1, 1], [], []>} : vector<8x8xbf16>, vector<8x8xbf16>, vector<8x8xf32> -> vector<8x8xf32>
    %57 = arith.truncf %56 : vector<8x8xf32> to vector<8x8xbf16>
    %c0_23 = arith.constant 0 : index
    %c8 = arith.constant 8 : index
    %58 = vector.load %arg22[%c0_23, %c8] : memref<16x32xbf16, #tpu.memory_space<vmem>>, vector<8x8xbf16>
    tpu.vector_store %arg22[%c0_23, %c8], %57 {strides = array<i32>} : memref<16x32xbf16, #tpu.memory_space<vmem>>, vector<8x8xbf16>,
    %59 = vector.extract_strided_slice %12 {offsets = [0, 16], sizes = [8, 8], strides = [1, 1]} : vector<16x96xbf16> to vector<8x8xbf16>
    %60 = vector.extract_strided_slice %12 {offsets = [0, 48], sizes = [8, 8], strides = [1, 1]} : vector<16x96xbf16> to vector<8x8xbf16>
    %61 = vector.extract_strided_slice %12 {offsets = [0, 80], sizes = [8, 8], strides = [1, 1]} : vector<16x96xbf16> to vector<8x8xbf16>
    %cst_24 = arith.constant dense<0.000000e+00> : vector<8x8xf32>
    %62 = tpu.matmul %59, %60, %cst_24 {dimension_numbers = #tpu.dot_dimension_numbers<[1], [1], [0], [0], [0, 0, 1, 0], [], []>} : vector<8x8xbf16>, vector<8x8xbf16>, vector<8x8xf32> -> vector<8x8xf32>
    %cst_25 = arith.constant 0.353553385 : f32
    %63 = vector.broadcast %cst_25 : f32 to vector<8x8xf32>
    %64 = arith.mulf %62, %63 : vector<8x8xf32>
    %65 = arith.addf %64, %16 : vector<8x8xf32>
    %cst_26 = arith.constant dense<0xFF800000> : vector<8xf32>
    %66 = vector.multi_reduction <maximumf>, %65, %cst_26 [1] : vector<8x8xf32> to vector<8xf32>
    %67 = vector.shape_cast %66 : vector<8xf32> to vector<8x1xf32>
    %68 = vector.broadcast %67 : vector<8x1xf32> to vector<8x8xf32>
    %69 = arith.subf %65, %68 : vector<8x8xf32>
    %70 = math.exp %69 : vector<8x8xf32>
    %cst_27 = arith.constant dense<0.000000e+00> : vector<8xf32>
    %71 = vector.multi_reduction <add>, %70, %cst_27 [1] : vector<8x8xf32> to vector<8xf32>
    %72 = vector.shape_cast %71 : vector<8xf32> to vector<8x1xf32>
    %73 = tpu.reciprocal %72 {approx = true} : vector<8x1xf32> -> vector<8x1xf32>
    %74 = vector.broadcast %73 : vector<8x1xf32> to vector<8x8xf32>
    %75 = arith.mulf %70, %74 : vector<8x8xf32>
    %76 = arith.truncf %75 : vector<8x8xf32> to vector<8x8xbf16>
    %cst_28 = arith.constant dense<0.000000e+00> : vector<8x8xf32>
    %77 = tpu.matmul %76, %61, %cst_28 {dimension_numbers = #tpu.dot_dimension_numbers<[1], [0], [0], [1], [0, 0, 1, 1], [], []>} : vector<8x8xbf16>, vector<8x8xbf16>, vector<8x8xf32> -> vector<8x8xf32>
    %78 = arith.truncf %77 : vector<8x8xf32> to vector<8x8xbf16>
    %c0_29 = arith.constant 0 : index
    %c16 = arith.constant 16 : index
    %79 = vector.load %arg22[%c0_29, %c16] : memref<16x32xbf16, #tpu.memory_space<vmem>>, vector<8x8xbf16>
    tpu.vector_store %arg22[%c0_29, %c16], %78 {strides = array<i32>} : memref<16x32xbf16, #tpu.memory_space<vmem>>, vector<8x8xbf16>,
    %80 = vector.extract_strided_slice %12 {offsets = [0, 24], sizes = [8, 8], strides = [1, 1]} : vector<16x96xbf16> to vector<8x8xbf16>
    %81 = vector.extract_strided_slice %12 {offsets = [0, 56], sizes = [8, 8], strides = [1, 1]} : vector<16x96xbf16> to vector<8x8xbf16>
    %82 = vector.extract_strided_slice %12 {offsets = [0, 88], sizes = [8, 8], strides = [1, 1]} : vector<16x96xbf16> to vector<8x8xbf16>
    %cst_30 = arith.constant dense<0.000000e+00> : vector<8x8xf32>
    %83 = tpu.matmul %80, %81, %cst_30 {dimension_numbers = #tpu.dot_dimension_numbers<[1], [1], [0], [0], [0, 0, 1, 0], [], []>} : vector<8x8xbf16>, vector<8x8xbf16>, vector<8x8xf32> -> vector<8x8xf32>
    %cst_31 = arith.constant 0.353553385 : f32
    %84 = vector.broadcast %cst_31 : f32 to vector<8x8xf32>
    %85 = arith.mulf %83, %84 : vector<8x8xf32>
    %86 = arith.addf %85, %16 : vector<8x8xf32>
    %cst_32 = arith.constant dense<0xFF800000> : vector<8xf32>
    %87 = vector.multi_reduction <maximumf>, %86, %cst_32 [1] : vector<8x8xf32> to vector<8xf32>
    %88 = vector.shape_cast %87 : vector<8xf32> to vector<8x1xf32>
    %89 = vector.broadcast %88 : vector<8x1xf32> to vector<8x8xf32>
    %90 = arith.subf %86, %89 : vector<8x8xf32>
    %91 = math.exp %90 : vector<8x8xf32>
    %cst_33 = arith.constant dense<0.000000e+00> : vector<8xf32>
    %92 = vector.multi_reduction <add>, %91, %cst_33 [1] : vector<8x8xf32> to vector<8xf32>
    %93 = vector.shape_cast %92 : vector<8xf32> to vector<8x1xf32>
    %94 = tpu.reciprocal %93 {approx = true} : vector<8x1xf32> -> vector<8x1xf32>
    %95 = vector.broadcast %94 : vector<8x1xf32> to vector<8x8xf32>
    %96 = arith.mulf %91, %95 : vector<8x8xf32>
    %97 = arith.truncf %96 : vector<8x8xf32> to vector<8x8xbf16>
    %cst_34 = arith.constant dense<0.000000e+00> : vector<8x8xf32>
    %98 = tpu.matmul %97, %82, %cst_34 {dimension_numbers = #tpu.dot_dimension_numbers<[1], [0], [0], [1], [0, 0, 1, 1], [], []>} : vector<8x8xbf16>, vector<8x8xbf16>, vector<8x8xf32> -> vector<8x8xf32>
    %99 = arith.truncf %98 : vector<8x8xf32> to vector<8x8xbf16>
    %c0_35 = arith.constant 0 : index
    %c24 = arith.constant 24 : index
    %100 = vector.load %arg22[%c0_35, %c24] : memref<16x32xbf16, #tpu.memory_space<vmem>>, vector<8x8xbf16>
    tpu.vector_store %arg22[%c0_35, %c24], %99 {strides = array<i32>} : memref<16x32xbf16, #tpu.memory_space<vmem>>, vector<8x8xbf16>,
    %c1 = arith.constant 1 : index
    %c0_36 = arith.constant 0 : index
    %c0_37 = arith.constant 0 : index
    %101 = vector.load %arg7[%c1, %c0_36, %c0_37] : memref<2x1x8xf32, #tpu.memory_space<vmem>>, vector<1x1x8xf32>
    %102 = vector.shape_cast %101 : vector<1x1x8xf32> to vector<1x8xf32>
    %103 = vector.shape_cast %102 : vector<1x8xf32> to vector<1x8xf32>
    %104 = vector.broadcast %103 : vector<1x8xf32> to vector<8x8xf32>
    %105 = vector.extract_strided_slice %12 {offsets = [8, 0], sizes = [8, 8], strides = [1, 1]} : vector<16x96xbf16> to vector<8x8xbf16>
    %106 = vector.extract_strided_slice %12 {offsets = [8, 32], sizes = [8, 8], strides = [1, 1]} : vector<16x96xbf16> to vector<8x8xbf16>
    %107 = vector.extract_strided_slice %12 {offsets = [8, 64], sizes = [8, 8], strides = [1, 1]} : vector<16x96xbf16> to vector<8x8xbf16>
    %cst_38 = arith.constant dense<0.000000e+00> : vector<8x8xf32>
    %108 = tpu.matmul %105, %106, %cst_38 {dimension_numbers = #tpu.dot_dimension_numbers<[1], [1], [0], [0], [0, 0, 1, 0], [], []>} : vector<8x8xbf16>, vector<8x8xbf16>, vector<8x8xf32> -> vector<8x8xf32>
    %cst_39 = arith.constant 0.353553385 : f32
    %109 = vector.broadcast %cst_39 : f32 to vector<8x8xf32>
    %110 = arith.mulf %108, %109 : vector<8x8xf32>
    %111 = arith.addf %110, %104 : vector<8x8xf32>
    %cst_40 = arith.constant dense<0xFF800000> : vector<8xf32>
    %112 = vector.multi_reduction <maximumf>, %111, %cst_40 [1] : vector<8x8xf32> to vector<8xf32>
    %113 = vector.shape_cast %112 : vector<8xf32> to vector<8x1xf32>
    %114 = vector.broadcast %113 : vector<8x1xf32> to vector<8x8xf32>
    %115 = arith.subf %111, %114 : vector<8x8xf32>
    %116 = math.exp %115 : vector<8x8xf32>
    %cst_41 = arith.constant dense<0.000000e+00> : vector<8xf32>
    %117 = vector.multi_reduction <add>, %116, %cst_41 [1] : vector<8x8xf32> to vector<8xf32>
    %118 = vector.shape_cast %117 : vector<8xf32> to vector<8x1xf32>
    %119 = tpu.reciprocal %118 {approx = true} : vector<8x1xf32> -> vector<8x1xf32>
    %120 = vector.broadcast %119 : vector<8x1xf32> to vector<8x8xf32>
    %121 = arith.mulf %116, %120 : vector<8x8xf32>
    %122 = arith.truncf %121 : vector<8x8xf32> to vector<8x8xbf16>
    %cst_42 = arith.constant dense<0.000000e+00> : vector<8x8xf32>
    %123 = tpu.matmul %122, %107, %cst_42 {dimension_numbers = #tpu.dot_dimension_numbers<[1], [0], [0], [1], [0, 0, 1, 1], [], []>} : vector<8x8xbf16>, vector<8x8xbf16>, vector<8x8xf32> -> vector<8x8xf32>
    %124 = arith.truncf %123 : vector<8x8xf32> to vector<8x8xbf16>
    %c8_43 = arith.constant 8 : index
    %c0_44 = arith.constant 0 : index
    %125 = vector.load %arg22[%c8_43, %c0_44] : memref<16x32xbf16, #tpu.memory_space<vmem>>, vector<8x8xbf16>
    tpu.vector_store %arg22[%c8_43, %c0_44], %124 {strides = array<i32>} : memref<16x32xbf16, #tpu.memory_space<vmem>>, vector<8x8xbf16>,
    %126 = vector.extract_strided_slice %12 {offsets = [8, 8], sizes = [8, 8], strides = [1, 1]} : vector<16x96xbf16> to vector<8x8xbf16>
    %127 = vector.extract_strided_slice %12 {offsets = [8, 40], sizes = [8, 8], strides = [1, 1]} : vector<16x96xbf16> to vector<8x8xbf16>
    %128 = vector.extract_strided_slice %12 {offsets = [8, 72], sizes = [8, 8], strides = [1, 1]} : vector<16x96xbf16> to vector<8x8xbf16>
    %cst_45 = arith.constant dense<0.000000e+00> : vector<8x8xf32>
    %129 = tpu.matmul %126, %127, %cst_45 {dimension_numbers = #tpu.dot_dimension_numbers<[1], [1], [0], [0], [0, 0, 1, 0], [], []>} : vector<8x8xbf16>, vector<8x8xbf16>, vector<8x8xf32> -> vector<8x8xf32>
    %cst_46 = arith.constant 0.353553385 : f32
    %130 = vector.broadcast %cst_46 : f32 to vector<8x8xf32>
    %131 = arith.mulf %129, %130 : vector<8x8xf32>
    %132 = arith.addf %131, %104 : vector<8x8xf32>
    %cst_47 = arith.constant dense<0xFF800000> : vector<8xf32>
    %133 = vector.multi_reduction <maximumf>, %132, %cst_47 [1] : vector<8x8xf32> to vector<8xf32>
    %134 = vector.shape_cast %133 : vector<8xf32> to vector<8x1xf32>
    %135 = vector.broadcast %134 : vector<8x1xf32> to vector<8x8xf32>
    %136 = arith.subf %132, %135 : vector<8x8xf32>
    %137 = math.exp %136 : vector<8x8xf32>
    %cst_48 = arith.constant dense<0.000000e+00> : vector<8xf32>
    %138 = vector.multi_reduction <add>, %137, %cst_48 [1] : vector<8x8xf32> to vector<8xf32>
    %139 = vector.shape_cast %138 : vector<8xf32> to vector<8x1xf32>
    %140 = tpu.reciprocal %139 {approx = true} : vector<8x1xf32> -> vector<8x1xf32>
    %141 = vector.broadcast %140 : vector<8x1xf32> to vector<8x8xf32>
    %142 = arith.mulf %137, %141 : vector<8x8xf32>
    %143 = arith.truncf %142 : vector<8x8xf32> to vector<8x8xbf16>
    %cst_49 = arith.constant dense<0.000000e+00> : vector<8x8xf32>
    %144 = tpu.matmul %143, %128, %cst_49 {dimension_numbers = #tpu.dot_dimension_numbers<[1], [0], [0], [1], [0, 0, 1, 1], [], []>} : vector<8x8xbf16>, vector<8x8xbf16>, vector<8x8xf32> -> vector<8x8xf32>
    %145 = arith.truncf %144 : vector<8x8xf32> to vector<8x8xbf16>
    %c8_50 = arith.constant 8 : index
    %c8_51 = arith.constant 8 : index
    %146 = vector.load %arg22[%c8_50, %c8_51] : memref<16x32xbf16, #tpu.memory_space<vmem>>, vector<8x8xbf16>
    tpu.vector_store %arg22[%c8_50, %c8_51], %145 {strides = array<i32>} : memref<16x32xbf16, #tpu.memory_space<vmem>>, vector<8x8xbf16>,
    %147 = vector.extract_strided_slice %12 {offsets = [8, 16], sizes = [8, 8], strides = [1, 1]} : vector<16x96xbf16> to vector<8x8xbf16>
    %148 = vector.extract_strided_slice %12 {offsets = [8, 48], sizes = [8, 8], strides = [1, 1]} : vector<16x96xbf16> to vector<8x8xbf16>
    %149 = vector.extract_strided_slice %12 {offsets = [8, 80], sizes = [8, 8], strides = [1, 1]} : vector<16x96xbf16> to vector<8x8xbf16>
    %cst_52 = arith.constant dense<0.000000e+00> : vector<8x8xf32>
    %150 = tpu.matmul %147, %148, %cst_52 {dimension_numbers = #tpu.dot_dimension_numbers<[1], [1], [0], [0], [0, 0, 1, 0], [], []>} : vector<8x8xbf16>, vector<8x8xbf16>, vector<8x8xf32> -> vector<8x8xf32>
    %cst_53 = arith.constant 0.353553385 : f32
    %151 = vector.broadcast %cst_53 : f32 to vector<8x8xf32>
    %152 = arith.mulf %150, %151 : vector<8x8xf32>
    %153 = arith.addf %152, %104 : vector<8x8xf32>
    %cst_54 = arith.constant dense<0xFF800000> : vector<8xf32>
    %154 = vector.multi_reduction <maximumf>, %153, %cst_54 [1] : vector<8x8xf32> to vector<8xf32>
    %155 = vector.shape_cast %154 : vector<8xf32> to vector<8x1xf32>
    %156 = vector.broadcast %155 : vector<8x1xf32> to vector<8x8xf32>
    %157 = arith.subf %153, %156 : vector<8x8xf32>
    %158 = math.exp %157 : vector<8x8xf32>
    %cst_55 = arith.constant dense<0.000000e+00> : vector<8xf32>
    %159 = vector.multi_reduction <add>, %158, %cst_55 [1] : vector<8x8xf32> to vector<8xf32>
    %160 = vector.shape_cast %159 : vector<8xf32> to vector<8x1xf32>
    %161 = tpu.reciprocal %160 {approx = true} : vector<8x1xf32> -> vector<8x1xf32>
    %162 = vector.broadcast %161 : vector<8x1xf32> to vector<8x8xf32>
    %163 = arith.mulf %158, %162 : vector<8x8xf32>
    %164 = arith.truncf %163 : vector<8x8xf32> to vector<8x8xbf16>
    %cst_56 = arith.constant dense<0.000000e+00> : vector<8x8xf32>
    %165 = tpu.matmul %164, %149, %cst_56 {dimension_numbers = #tpu.dot_dimension_numbers<[1], [0], [0], [1], [0, 0, 1, 1], [], []>} : vector<8x8xbf16>, vector<8x8xbf16>, vector<8x8xf32> -> vector<8x8xf32>
    %166 = arith.truncf %165 : vector<8x8xf32> to vector<8x8xbf16>
    %c8_57 = arith.constant 8 : index
    %c16_58 = arith.constant 16 : index
    %167 = vector.load %arg22[%c8_57, %c16_58] : memref<16x32xbf16, #tpu.memory_space<vmem>>, vector<8x8xbf16>
    tpu.vector_store %arg22[%c8_57, %c16_58], %166 {strides = array<i32>} : memref<16x32xbf16, #tpu.memory_space<vmem>>, vector<8x8xbf16>,
    %168 = vector.extract_strided_slice %12 {offsets = [8, 24], sizes = [8, 8], strides = [1, 1]} : vector<16x96xbf16> to vector<8x8xbf16>
    %169 = vector.extract_strided_slice %12 {offsets = [8, 56], sizes = [8, 8], strides = [1, 1]} : vector<16x96xbf16> to vector<8x8xbf16>
    %170 = vector.extract_strided_slice %12 {offsets = [8, 88], sizes = [8, 8], strides = [1, 1]} : vector<16x96xbf16> to vector<8x8xbf16>
    %cst_59 = arith.constant dense<0.000000e+00> : vector<8x8xf32>
    %171 = tpu.matmul %168, %169, %cst_59 {dimension_numbers = #tpu.dot_dimension_numbers<[1], [1], [0], [0], [0, 0, 1, 0], [], []>} : vector<8x8xbf16>, vector<8x8xbf16>, vector<8x8xf32> -> vector<8x8xf32>
    %cst_60 = arith.constant 0.353553385 : f32
    %172 = vector.broadcast %cst_60 : f32 to vector<8x8xf32>
    %173 = arith.mulf %171, %172 : vector<8x8xf32>
    %174 = arith.addf %173, %104 : vector<8x8xf32>
    %cst_61 = arith.constant dense<0xFF800000> : vector<8xf32>
    %175 = vector.multi_reduction <maximumf>, %174, %cst_61 [1] : vector<8x8xf32> to vector<8xf32>
    %176 = vector.shape_cast %175 : vector<8xf32> to vector<8x1xf32>
    %177 = vector.broadcast %176 : vector<8x1xf32> to vector<8x8xf32>
    %178 = arith.subf %174, %177 : vector<8x8xf32>
    %179 = math.exp %178 : vector<8x8xf32>
    %cst_62 = arith.constant dense<0.000000e+00> : vector<8xf32>
    %180 = vector.multi_reduction <add>, %179, %cst_62 [1] : vector<8x8xf32> to vector<8xf32>
    %181 = vector.shape_cast %180 : vector<8xf32> to vector<8x1xf32>
    %182 = tpu.reciprocal %181 {approx = true} : vector<8x1xf32> -> vector<8x1xf32>
    %183 = vector.broadcast %182 : vector<8x1xf32> to vector<8x8xf32>
    %184 = arith.mulf %179, %183 : vector<8x8xf32>
    %185 = arith.truncf %184 : vector<8x8xf32> to vector<8x8xbf16>
    %cst_63 = arith.constant dense<0.000000e+00> : vector<8x8xf32>
    %186 = tpu.matmul %185, %170, %cst_63 {dimension_numbers = #tpu.dot_dimension_numbers<[1], [0], [0], [1], [0, 0, 1, 1], [], []>} : vector<8x8xbf16>, vector<8x8xbf16>, vector<8x8xf32> -> vector<8x8xf32>
    %187 = arith.truncf %186 : vector<8x8xf32> to vector<8x8xbf16>
    %c8_64 = arith.constant 8 : index
    %c24_65 = arith.constant 24 : index
    %188 = vector.load %arg22[%c8_64, %c24_65] : memref<16x32xbf16, #tpu.memory_space<vmem>>, vector<8x8xbf16>
    tpu.vector_store %arg22[%c8_64, %c24_65], %187 {strides = array<i32>} : memref<16x32xbf16, #tpu.memory_space<vmem>>, vector<8x8xbf16>,
    %c0_66 = arith.constant 0 : index
    %c0_67 = arith.constant 0 : index
    %189 = vector.load %arg22[%c0_66, %c0_67] : memref<16x32xbf16, #tpu.memory_space<vmem>>, vector<16x32xbf16>
    %c0_68 = arith.constant 0 : index
    %c0_69 = arith.constant 0 : index
    %c0_70 = arith.constant 0 : index
    %190 = vector.load %arg10[%c0_68, %c0_69, %c0_70] : memref<1x32x32xbf16, #tpu.memory_space<vmem>>, vector<1x32x32xbf16>
    %191 = vector.shape_cast %190 : vector<1x32x32xbf16> to vector<32x32xbf16>
    %cst_71 = arith.constant dense<0.000000e+00> : vector<16x32xf32>
    %192 = tpu.matmul %189, %191, %cst_71 {dimension_numbers = #tpu.dot_dimension_numbers<[1], [0], [0], [1], [0, 0, 1, 1], [], []>} : vector<16x32xbf16>, vector<32x32xbf16>, vector<16x32xf32> -> vector<16x32xf32>
    %c0_72 = arith.constant 0 : index
    %c0_73 = arith.constant 0 : index
    %c0_74 = arith.constant 0 : index
    %193 = vector.load %arg11[%c0_72, %c0_73, %c0_74] : memref<1x1x32xf32, #tpu.memory_space<vmem>>, vector<1x1x32xf32>
    %194 = vector.shape_cast %193 : vector<1x1x32xf32> to vector<1x32xf32>
    %195 = vector.broadcast %194 : vector<1x32xf32> to vector<16x32xf32>
    %196 = arith.addf %192, %195 : vector<16x32xf32>
    %197 = arith.addf %196, %3 : vector<16x32xf32>
    %c0_75 = arith.constant 0 : index
    %c0_76 = arith.constant 0 : index
    %c0_77 = arith.constant 0 : index
    %198 = vector.load %arg12[%c0_75, %c0_76, %c0_77] : memref<1x1x32xf32, #tpu.memory_space<vmem>>, vector<1x1x32xf32>
    %199 = vector.shape_cast %198 : vector<1x1x32xf32> to vector<1x32xf32>
    %c0_78 = arith.constant 0 : index
    %c0_79 = arith.constant 0 : index
    %c0_80 = arith.constant 0 : index
    %200 = vector.load %arg13[%c0_78, %c0_79, %c0_80] : memref<1x1x32xf32, #tpu.memory_space<vmem>>, vector<1x1x32xf32>
    %201 = vector.shape_cast %200 : vector<1x1x32xf32> to vector<1x32xf32>
    %cst_81 = arith.constant dense<0.000000e+00> : vector<16xf32>
    %202 = vector.multi_reduction <add>, %197, %cst_81 [1] : vector<16x32xf32> to vector<16xf32>
    %203 = vector.shape_cast %202 : vector<16xf32> to vector<16x1xf32>
    %cst_82 = arith.constant 3.200000e+01 : f32
    %204 = vector.broadcast %cst_82 : f32 to vector<16x1xf32>
    %205 = arith.divf %203, %204 : vector<16x1xf32>
    %206 = vector.broadcast %205 : vector<16x1xf32> to vector<16x32xf32>
    %207 = arith.subf %197, %206 : vector<16x32xf32>
    %208 = arith.mulf %207, %207 : vector<16x32xf32>
    %cst_83 = arith.constant dense<0.000000e+00> : vector<16xf32>
    %209 = vector.multi_reduction <add>, %208, %cst_83 [1] : vector<16x32xf32> to vector<16xf32>
    %210 = vector.shape_cast %209 : vector<16xf32> to vector<16x1xf32>
    %cst_84 = arith.constant 3.200000e+01 : f32
    %211 = vector.broadcast %cst_84 : f32 to vector<16x1xf32>
    %212 = arith.divf %210, %211 : vector<16x1xf32>
    %213 = vector.broadcast %205 : vector<16x1xf32> to vector<16x32xf32>
    %214 = arith.subf %197, %213 : vector<16x32xf32>
    %cst_85 = arith.constant 9.99999996E-13 : f32
    %215 = vector.broadcast %cst_85 : f32 to vector<16x1xf32>
    %216 = arith.addf %212, %215 : vector<16x1xf32>
    %217 = math.rsqrt %216 : vector<16x1xf32>
    %218 = vector.broadcast %217 : vector<16x1xf32> to vector<16x32xf32>
    %219 = arith.mulf %214, %218 : vector<16x32xf32>
    %220 = vector.broadcast %199 : vector<1x32xf32> to vector<16x32xf32>
    %221 = arith.mulf %220, %219 : vector<16x32xf32>
    %222 = vector.broadcast %201 : vector<1x32xf32> to vector<16x32xf32>
    %223 = arith.addf %221, %222 : vector<16x32xf32>
    %224 = arith.truncf %223 : vector<16x32xf32> to vector<16x32xbf16>
    %cst_86 = arith.constant 0.000000e+00 : f32
    %225 = vector.broadcast %cst_86 : f32 to vector<16x32xf32>
    %c0_87 = arith.constant 0 : index
    %c0_88 = arith.constant 0 : index
    %c0_89 = arith.constant 0 : index
    %226 = vector.load %arg14[%c0_87, %c0_88, %c0_89] : memref<1x32x64xbf16, #tpu.memory_space<vmem>>, vector<1x32x64xbf16>
    %227 = vector.shape_cast %226 : vector<1x32x64xbf16> to vector<32x64xbf16>
    %cst_90 = arith.constant dense<0.000000e+00> : vector<16x64xf32>
    %228 = tpu.matmul %224, %227, %cst_90 {dimension_numbers = #tpu.dot_dimension_numbers<[1], [0], [0], [1], [0, 0, 1, 1], [], []>} : vector<16x32xbf16>, vector<32x64xbf16>, vector<16x64xf32> -> vector<16x64xf32>
    %c0_91 = arith.constant 0 : index
    %c0_92 = arith.constant 0 : index
    %c0_93 = arith.constant 0 : index
    %229 = vector.load %arg15[%c0_91, %c0_92, %c0_93] : memref<1x1x64xf32, #tpu.memory_space<vmem>>, vector<1x1x64xf32>
    %230 = vector.shape_cast %229 : vector<1x1x64xf32> to vector<1x64xf32>
    %231 = vector.broadcast %230 : vector<1x64xf32> to vector<16x64xf32>
    %232 = arith.addf %228, %231 : vector<16x64xf32>
    %cst_94 = arith.constant 5.000000e-01 : f32
    %233 = vector.broadcast %cst_94 : f32 to vector<16x64xf32>
    %234 = arith.mulf %233, %232 : vector<16x64xf32>
    %cst_95 = arith.constant 4.471500e-02 : f32
    %235 = vector.broadcast %cst_95 : f32 to vector<16x64xf32>
    %236 = arith.mulf %235, %232 : vector<16x64xf32>
    %237 = arith.mulf %236, %232 : vector<16x64xf32>
    %238 = arith.mulf %237, %232 : vector<16x64xf32>
    %239 = arith.addf %232, %238 : vector<16x64xf32>
    %cst_96 = arith.constant 0.797884583 : f32
    %240 = vector.broadcast %cst_96 : f32 to vector<16x64xf32>
    %241 = arith.mulf %240, %239 : vector<16x64xf32>
    %242 = math.tanh %241 : vector<16x64xf32>
    %cst_97 = arith.constant 1.000000e+00 : f32
    %243 = vector.broadcast %cst_97 : f32 to vector<16x64xf32>
    %244 = arith.addf %243, %242 : vector<16x64xf32>
    %245 = arith.mulf %234, %244 : vector<16x64xf32>
    %246 = arith.truncf %245 : vector<16x64xf32> to vector<16x64xbf16>
    %c0_98 = arith.constant 0 : index
    %c0_99 = arith.constant 0 : index
    %c0_100 = arith.constant 0 : index
    %247 = vector.load %arg16[%c0_98, %c0_99, %c0_100] : memref<1x64x32xbf16, #tpu.memory_space<vmem>>, vector<1x64x32xbf16>
    %248 = vector.shape_cast %247 : vector<1x64x32xbf16> to vector<64x32xbf16>
    %cst_101 = arith.constant dense<0.000000e+00> : vector<16x32xf32>
    %249 = tpu.matmul %246, %248, %cst_101 {dimension_numbers = #tpu.dot_dimension_numbers<[1], [0], [0], [1], [0, 0, 1, 1], [], []>} : vector<16x64xbf16>, vector<64x32xbf16>, vector<16x32xf32> -> vector<16x32xf32>
    %250 = arith.addf %225, %249 : vector<16x32xf32>
    %c0_102 = arith.constant 0 : index
    %c0_103 = arith.constant 0 : index
    %c0_104 = arith.constant 0 : index
    %251 = vector.load %arg17[%c0_102, %c0_103, %c0_104] : memref<1x1x32xf32, #tpu.memory_space<vmem>>, vector<1x1x32xf32>
    %252 = vector.shape_cast %251 : vector<1x1x32xf32> to vector<1x32xf32>
    %253 = vector.broadcast %252 : vector<1x32xf32> to vector<16x32xf32>
    %254 = arith.addf %250, %253 : vector<16x32xf32>
    %255 = arith.addf %254, %223 : vector<16x32xf32>
    %c0_105 = arith.constant 0 : index
    %c0_106 = arith.constant 0 : index
    %c0_107 = arith.constant 0 : index
    %256 = vector.load %arg18[%c0_105, %c0_106, %c0_107] : memref<1x1x32xf32, #tpu.memory_space<vmem>>, vector<1x1x32xf32>
    %257 = vector.shape_cast %256 : vector<1x1x32xf32> to vector<1x32xf32>
    %c0_108 = arith.constant 0 : index
    %c0_109 = arith.constant 0 : index
    %c0_110 = arith.constant 0 : index
    %258 = vector.load %arg19[%c0_108, %c0_109, %c0_110] : memref<1x1x32xf32, #tpu.memory_space<vmem>>, vector<1x1x32xf32>
    %259 = vector.shape_cast %258 : vector<1x1x32xf32> to vector<1x32xf32>
    %cst_111 = arith.constant dense<0.000000e+00> : vector<16xf32>
    %260 = vector.multi_reduction <add>, %255, %cst_111 [1] : vector<16x32xf32> to vector<16xf32>
    %261 = vector.shape_cast %260 : vector<16xf32> to vector<16x1xf32>
    %cst_112 = arith.constant 3.200000e+01 : f32
    %262 = vector.broadcast %cst_112 : f32 to vector<16x1xf32>
    %263 = arith.divf %261, %262 : vector<16x1xf32>
    %264 = vector.broadcast %263 : vector<16x1xf32> to vector<16x32xf32>
    %265 = arith.subf %255, %264 : vector<16x32xf32>
    %266 = arith.mulf %265, %265 : vector<16x32xf32>
    %cst_113 = arith.constant dense<0.000000e+00> : vector<16xf32>
    %267 = vector.multi_reduction <add>, %266, %cst_113 [1] : vector<16x32xf32> to vector<16xf32>
    %268 = vector.shape_cast %267 : vector<16xf32> to vector<16x1xf32>
    %cst_114 = arith.constant 3.200000e+01 : f32
    %269 = vector.broadcast %cst_114 : f32 to vector<16x1xf32>
    %270 = arith.divf %268, %269 : vector<16x1xf32>
    %271 = vector.broadcast %263 : vector<16x1xf32> to vector<16x32xf32>
    %272 = arith.subf %255, %271 : vector<16x32xf32>
    %cst_115 = arith.constant 9.99999996E-13 : f32
    %273 = vector.broadcast %cst_115 : f32 to vector<16x1xf32>
    %274 = arith.addf %270, %273 : vector<16x1xf32>
    %275 = math.rsqrt %274 : vector<16x1xf32>
    %276 = vector.broadcast %275 : vector<16x1xf32> to vector<16x32xf32>
    %277 = arith.mulf %272, %276 : vector<16x32xf32>
    %278 = vector.broadcast %257 : vector<1x32xf32> to vector<16x32xf32>
    %279 = arith.mulf %278, %277 : vector<16x32xf32>
    %280 = vector.broadcast %259 : vector<1x32xf32> to vector<16x32xf32>
    %281 = arith.addf %279, %280 : vector<16x32xf32>
    %c0_116 = arith.constant 0 : index
    %c0_117 = arith.constant 0 : index
    %282 = vector.load %arg21[%c0_116, %c0_117] : memref<16x32xf32, #tpu.memory_space<vmem>>, vector<16x32xf32>
    tpu.vector_store %arg21[%c0_116, %c0_117], %281 {strides = array<i32>} : memref<16x32xf32, #tpu.memory_space<vmem>>, vector<16x32xf32>,
    %c1_i32 = arith.constant 1 : i32
    %283 = arith.cmpi eq, %arg1, %c1_i32 : i32
    %284 = arith.extui %283 : i1 to i32
    %c0_i32_118 = arith.constant 0 : i32
    %285 = arith.cmpi ne, %284, %c0_i32_118 : i32
    scf.if %285 {
      %286 = vector.shape_cast %281 : vector<16x32xf32> to vector<2x8x32xf32>
      %c0_119 = arith.constant 0 : index
      %c0_120 = arith.constant 0 : index
      %c0_121 = arith.constant 0 : index
      %287 = vector.load %arg20[%c0_119, %c0_120, %c0_121] : memref<2x8x32xf32, #tpu.memory_space<vmem>>, vector<2x8x32xf32>
      tpu.vector_store %arg20[%c0_119, %c0_120, %c0_121], %286 {strides = array<i32>} : memref<2x8x32xf32, #tpu.memory_space<vmem>>, vector<2x8x32xf32>,
    } else {
    }
    return
  }
  func.func @transform_0(%arg0: i32, %arg1: i32) -> (i32, i32, i32) {
    %c0_i32 = arith.constant 0 : i32
    %c0_i32_0 = arith.constant 0 : i32
    %c0_i32_1 = arith.constant 0 : i32
    return %arg0, %c0_i32, %c0_i32_0 : i32, i32, i32
  }
  func.func @transform_1(%arg0: i32, %arg1: i32) -> (i32, i32) {
    %c0_i32 = arith.constant 0 : i32
    %c0_i32_0 = arith.constant 0 : i32
    %c0_i32_1 = arith.constant 0 : i32
    return %c0_i32, %c0_i32_0 : i32, i32
  }
  func.func @transform_2(%arg0: i32, %arg1: i32) -> (i32, i32) {
    %c0_i32 = arith.constant 0 : i32
    %c0_i32_0 = arith.constant 0 : i32
    %c0_i32_1 = arith.constant 0 : i32
    return %c0_i32, %c0_i32_0 : i32, i32
  }
  func.func @transform_3(%arg0: i32, %arg1: i32) -> (i32, i32) {
    %c0_i32 = arith.constant 0 : i32
    %c0_i32_0 = arith.constant 0 : i32
    %c0_i32_1 = arith.constant 0 : i32
    return %c0_i32, %c0_i32_0 : i32, i32
  }
  func.func @transform_4(%arg0: i32, %arg1: i32) -> (i32, i32) {
    %c0_i32 = arith.constant 0 : i32
    %c0_i32_0 = arith.constant 0 : i32
    %c0_i32_1 = arith.constant 0 : i32
    return %c0_i32, %c0_i32_0 : i32, i32
  }
  func.func @transform_5(%arg0: i32, %arg1: i32) -> (i32, i32, i32) {
    %c0_i32 = arith.constant 0 : i32
    %c0_i32_0 = arith.constant 0 : i32
    %c0_i32_1 = arith.constant 0 : i32
    return %arg0, %c0_i32, %c0_i32_0 : i32, i32, i32
  }
  func.func @transform_6(%arg0: i32, %arg1: i32) -> (i32, i32, i32) {
    %c0_i32 = arith.constant 0 : i32
    %c0_i32_0 = arith.constant 0 : i32
    %c0_i32_1 = arith.constant 0 : i32
    return %arg1, %c0_i32, %c0_i32_0 : i32, i32, i32
  }
  func.func @transform_7(%arg0: i32, %arg1: i32) -> (i32, i32, i32) {
    %c0_i32 = arith.constant 0 : i32
    %c0_i32_0 = arith.constant 0 : i32
    %c0_i32_1 = arith.constant 0 : i32
    return %arg1, %c0_i32, %c0_i32_0 : i32, i32, i32
  }
  func.func @transform_8(%arg0: i32, %arg1: i32) -> (i32, i32, i32) {
    %c0_i32 = arith.constant 0 : i32
    %c0_i32_0 = arith.constant 0 : i32
    %c0_i32_1 = arith.constant 0 : i32
    return %arg1, %c0_i32, %c0_i32_0 : i32, i32, i32
  }
  func.func @transform_9(%arg0: i32, %arg1: i32) -> (i32, i32, i32) {
    %c0_i32 = arith.constant 0 : i32
    %c0_i32_0 = arith.constant 0 : i32
    %c0_i32_1 = arith.constant 0 : i32
    return %arg1, %c0_i32, %c0_i32_0 : i32, i32, i32
  }
  func.func @transform_10(%arg0: i32, %arg1: i32) -> (i32, i32, i32) {
    %c0_i32 = arith.constant 0 : i32
    %c0_i32_0 = arith.constant 0 : i32
    %c0_i32_1 = arith.constant 0 : i32
    return %arg1, %c0_i32, %c0_i32_0 : i32, i32, i32
  }
  func.func @transform_11(%arg0: i32, %arg1: i32) -> (i32, i32, i32) {
    %c0_i32 = arith.constant 0 : i32
    %c0_i32_0 = arith.constant 0 : i32
    %c0_i32_1 = arith.constant 0 : i32
    return %arg1, %c0_i32, %c0_i32_0 : i32, i32, i32
  }
  func.func @transform_12(%arg0: i32, %arg1: i32) -> (i32, i32, i32) {
    %c0_i32 = arith.constant 0 : i32
    %c0_i32_0 = arith.constant 0 : i32
    %c0_i32_1 = arith.constant 0 : i32
    return %arg1, %c0_i32, %c0_i32_0 : i32, i32, i32
  }
  func.func @transform_13(%arg0: i32, %arg1: i32) -> (i32, i32, i32) {
    %c0_i32 = arith.constant 0 : i32
    %c0_i32_0 = arith.constant 0 : i32
    %c0_i32_1 = arith.constant 0 : i32
    return %arg1, %c0_i32, %c0_i32_0 : i32, i32, i32
  }
  func.func @transform_14(%arg0: i32, %arg1: i32) -> (i32, i32, i32) {
    %c0_i32 = arith.constant 0 : i32
    %c0_i32_0 = arith.constant 0 : i32
    %c0_i32_1 = arith.constant 0 : i32
    return %arg1, %c0_i32, %c0_i32_0 : i32, i32, i32
  }
  func.func @transform_15(%arg0: i32, %arg1: i32) -> (i32, i32, i32) {
    %c0_i32 = arith.constant 0 : i32
    %c0_i32_0 = arith.constant 0 : i32
    %c0_i32_1 = arith.constant 0 : i32
    return %arg1, %c0_i32, %c0_i32_0 : i32, i32, i32
  }
  func.func @transform_16(%arg0: i32, %arg1: i32) -> (i32, i32, i32) {
    %c0_i32 = arith.constant 0 : i32
    %c0_i32_0 = arith.constant 0 : i32
    %c0_i32_1 = arith.constant 0 : i32
    return %arg1, %c0_i32, %c0_i32_0 : i32, i32, i32
  }
  func.func @transform_17(%arg0: i32, %arg1: i32) -> (i32, i32, i32) {
    %c0_i32 = arith.constant 0 : i32
    %c0_i32_0 = arith.constant 0 : i32
    %c0_i32_1 = arith.constant 0 : i32
    return %arg1, %c0_i32, %c0_i32_0 : i32, i32, i32
  }
  func.func @transform_18(%arg0: i32, %arg1: i32) -> (i32, i32, i32) {
    %c0_i32 = arith.constant 0 : i32
    %c0_i32_0 = arith.constant 0 : i32
    %c0_i32_1 = arith.constant 0 : i32
    return %arg0, %c0_i32, %c0_i32_0 : i32, i32, i32
  }
}

</mosaic_0001>

<llo_original>
// kernel: tpu_custom_call.1
$region0: #{tpu_custom_call.1}
  #allocation0 [shape = 'u32[]', space=smem, size = 0x4, offset = 0x4, fixed_abs, tag = 'smem constant byte address 0x4 - core index']
  #allocation1 [shape = 'u32[72,128]{1,0:T(1,128)}', space=vmem, size = 0x9000, scoped, tag = 'internal scratch']
  #allocation2 [shape = 'f32[16,32]{1,0:T(8,128)}', space=vmem, size = 0x2000, scoped, tag = 'scratch operand']
  #allocation3 [shape = 'bf16[16,32]{1,0:T(8,128)(2,1)}', space=vmem, size = 0x1000, scoped, tag = 'scratch operand']
  %s0 = inlined_call_operand.vmem [shape: f32[4,8,32], index: 0, kind: input, shape index: {}]
  %s1 = inlined_call_operand.hbm [shape: f32[8,32], index: 1, kind: input, shape index: {}]
  %s2 = inlined_call_operand.vmem [shape: f32[1,32], index: 2, kind: input, shape index: {}]
  %s3 = inlined_call_operand.hbm [shape: f32[1,32], index: 3, kind: input, shape index: {}]
  %s4 = inlined_call_operand.hbm [shape: f32[1,32], index: 4, kind: input, shape index: {}]
  %s5 = inlined_call_operand.hbm [shape: f32[4,1,8], index: 5, kind: input, shape index: {}]
  %s6 = inlined_call_operand.vmem [shape: bf16[2,32,96], index: 6, kind: input, shape index: {}]
  %s7 = inlined_call_operand.vmem [shape: f32[2,1,96], index: 7, kind: input, shape index: {}]
  %s8 = inlined_call_operand.vmem [shape: bf16[2,32,32], index: 8, kind: input, shape index: {}]
  %s9 = inlined_call_operand.vmem [shape: f32[2,1,32], index: 9, kind: input, shape index: {}]
  %s10 = inlined_call_operand.vmem [shape: f32[2,1,32], index: 10, kind: input, shape index: {}]
  %s11 = inlined_call_operand.vmem [shape: f32[2,1,32], index: 11, kind: input, shape index: {}]
  %s12 = inlined_call_operand.hbm [shape: bf16[2,32,64], index: 12, kind: input, shape index: {}]
  %s13 = inlined_call_operand.vmem [shape: f32[2,1,64], index: 13, kind: input, shape index: {}]
  %s14 = inlined_call_operand.vmem [shape: bf16[2,64,32], index: 14, kind: input, shape index: {}]
  %s15 = inlined_call_operand.vmem [shape: f32[2,1,32], index: 15, kind: input, shape index: {}]
  %s16 = inlined_call_operand.vmem [shape: f32[2,1,32], index: 16, kind: input, shape index: {}]
  %s17 = inlined_call_operand.hbm [shape: f32[2,1,32], index: 17, kind: input, shape index: {}]
  %s18 = inlined_call_operand.hbm [shape: f32[4,8,32], index: 18, kind: output, shape index: {}]
  %s19 = sld [smem:[#allocation0]]
  $region137: #{tpu_custom_call.1} parent=0
    _
  %s21 = ssub.s32 1, %s19
  %s22 = scalar_select 0, %s21, %s19
  $region1: #{tpu_custom_call.1} parent=0
    #allocation4 [shape = 'u8[4096]{0}', space=vmem, size = 0x1000, scoped, tag = 'input window, operand 1, single buffered']
    #allocation5 [shape = 's32[2]{0}', space=sflag, size = 0x8, scoped, tag = 'scoped memory for tpu_custom_call.1']
    #allocation6 [shape = 's32[2]{0}', space=sflag, size = 0x8, scoped, tag = 'scoped memory for tpu_custom_call.1']
    #allocation7 [shape = 'u8[512]{0}', space=vmem, size = 0x400, scoped, tag = 'input window, operand 3, single buffered']
    #allocation8 [shape = 's32[1]{0}', space=sflag, size = 0x4, scoped, tag = 'scoped memory for tpu_custom_call.1']
    #allocation9 [shape = 'u8[512]{0}', space=vmem, size = 0x400, scoped, tag = 'input window, operand 4, single buffered']
    #allocation10 [shape = 'u8[2048]{0}', space=vmem, size = 0x800, scoped, tag = 'input window, operand 5']
    #allocation11 [shape = 's32[2]{0}', space=sflag, size = 0x8, scoped, tag = 'scoped memory for tpu_custom_call.1']
    #allocation12 [shape = 'u8[16384]{0}', space=vmem, size = 0x4000, scoped, tag = 'input window, operand 12']
    #allocation13 [shape = 'u8[1024]{0}', space=vmem, size = 0x400, scoped, tag = 'input window, operand 17']
    #allocation14 [shape = 's32[2]{0}', space=sflag, size = 0x8, scoped, tag = 'scoped memory for tpu_custom_call.1']
    #allocation15 [shape = 'u8[16384]{0}', space=vmem, size = 0x4000, scoped, tag = 'output window, operand 0']
    %23 = vsyncpa [#allocation5], 0
    %24 = vsyncpa [#allocation8], 0
    %25 = vsyncpa [#allocation11], 0
    %s26 = scalar_lea.sflag [#allocation11], 1
    %27 = vsyncpa %s26, 0
    %28 = vsyncpa [#allocation14], 0
    %s29 = scalar_lea.sflag [#allocation14], 1
    %30 = vsyncpa %s29, 0
    %31 = vsyncpa [#allocation6], 0
    %s32 = scalar_lea.sflag [#allocation6], 1
    %33 = vsyncpa %s32, 0
    loop: start=0, step=1, limit=6
    $region2: #{tpu_custom_call.1} parent=1 // loop_pre_header
      _
    $region3: #{tpu_custom_call.1} parent=1 // loop_header
      %s35 = sphi 0, %s39
      %p36 = scmp.ge.s32.totalorder %s35, 6
      %s42 = sphi 0, %s54
      %s43 = sphi 0, %s50
      %s44 = sphi 0, %s42
      %s45 = sphi 0, %s43
      %s46 = sphi 0, %s44
      %s47 = sphi 0, %s45
      %s57 = sphi 0, %s59
      %s60 = sphi 0, %s57
      %s61 = sphi 0, %s60
      %s77 = sphi 0, %s61
      %s81 = sphi 0, %s81
      %s83 = sphi 0, %s81
      %s84 = sphi 0, %s83
      %s98 = sphi 0, %s84
      %s102 = sphi 0, %s102
      %s104 = sphi 0, %s102
      %s105 = sphi 0, %s104
      %s119 = sphi 0, %s105
      %s123 = sphi 0, %s123
      %s125 = sphi 0, %s123
      %s126 = sphi 0, %s125
      %s140 = sphi 0, %s126
      %s144 = sphi 0, %s144
      %s146 = sphi 0, %s144
      %s147 = sphi 0, %s146
      %s161 = sphi 0, %s147
      %s167 = sphi 0, %s169
      %s170 = sphi 0, %s167
      %s171 = sphi 0, %s170
      %s187 = sphi 0, %s171
      %s193 = sphi 0, %s195
      %s196 = sphi 0, %s193
      %s197 = sphi 0, %s196
      %s213 = sphi 0, %s197
      %s219 = sphi 0, %s221
      %s222 = sphi 0, %s219
      %s223 = sphi 0, %s222
      %s239 = sphi 0, %s223
      %s245 = sphi 0, %s247
      %s248 = sphi 0, %s245
      %s249 = sphi 0, %s248
      %s265 = sphi 0, %s249
      %s271 = sphi 0, %s273
      %s274 = sphi 0, %s271
      %s275 = sphi 0, %s274
      %s291 = sphi 0, %s275
      %s297 = sphi 0, %s299
      %s300 = sphi 0, %s297
      %s301 = sphi 0, %s300
      %s317 = sphi 0, %s301
      %s323 = sphi 0, %s325
      %s326 = sphi 0, %s323
      %s327 = sphi 0, %s326
      %s343 = sphi 0, %s327
      %s349 = sphi 0, %s351
      %s352 = sphi 0, %s349
      %s353 = sphi 0, %s352
      %s369 = sphi 0, %s353
      %s375 = sphi 0, %s377
      %s378 = sphi 0, %s375
      %s379 = sphi 0, %s378
      %s395 = sphi 0, %s379
      %s401 = sphi 0, %s403
      %s404 = sphi 0, %s401
      %s405 = sphi 0, %s404
      %s421 = sphi 0, %s405
      %s427 = sphi 0, %s429
      %s430 = sphi 0, %s427
      %s431 = sphi 0, %s430
      %s447 = sphi 0, %s431
      %s453 = sphi 0, %s455
      %s456 = sphi 0, %s453
      %s457 = sphi 0, %s456
      %s473 = sphi 0, %s457
      %s479 = sphi 0, %s481
      %s482 = sphi 0, %s479
      %s483 = sphi 0, %s482
      %s499 = sphi 0, %s483
      %s505 = sphi 0, %s507
      %s508 = sphi 0, %s505
      %s509 = sphi 0, %s508
      %s525 = sphi 0, %s509
    $region4: #{tpu_custom_call.1} parent=1 // loop_header_branch
      %38 = sbr.rel (%p36) target = $region8
    $region5: #{tpu_custom_call.1} parent=1 // loop_body
      %s40 = ssub.s32 %s35, 1
      %s41 = ssub.s32 %s35, 2
      %s48 = sadd.s32 1, %s43
      %p49 = scmp.ge.s32.totalorder %s48, 2
      %s50 = scalar_select %p49, 0, %s48
      %s51 = sadd.s32 1, %s42
      %s52 = scalar_select %p49, %s51, %s42
      %p53 = scmp.ge.s32.totalorder %s52, 2
      %s54 = scalar_select %p53, 0, %s52
      %s55 = ssub.s32 %s42, %s54
      %p56 = scmp.eq.s32.totalorder %s55, 0
      %s58 = sadd.s32 %s57, 1
      %s59 = scalar_select %p56, %s57, %s58
      %p62 = pneg %p56
      %p63 = scmp.eq.s32.totalorder %s35, 3
      %p64 = por %p62, %p63
      %p65 = scmp.ne.s32.totalorder %s57, %s60
      %p66 = scmp.eq.s32.totalorder %s35, 0
      %p67 = por %p65, %p66
      %p68 = scmp.ne.s32.totalorder %s57, %s60
      %p69 = scmp.eq.s32.totalorder %s40, 3
      %p70 = por %p68, %p69
      %p71 = scmp.ne.s32.totalorder %s60, %s61
      %p72 = scmp.eq.s32.totalorder %s40, 0
      %p73 = por %p71, %p72
      %p74 = scmp.ne.s32.totalorder %s60, %s61
      %p75 = scmp.eq.s32.totalorder %s41, 3
      %p76 = por %p74, %p75
      %p78 = scmp.ne.s32.totalorder %s61, %s77
      %p79 = scmp.eq.s32.totalorder %s41, 0
      %p80 = por %p78, %p79
      %s82 = sadd.s32 %s81, 1
      %p85 = scmp.eq.s32.totalorder %s35, 3
      %p86 = scmp.ne.s32.totalorder %s81, %s83
      %p87 = scmp.eq.s32.totalorder %s35, 0
      %p88 = por %p86, %p87
      %p89 = scmp.ne.s32.totalorder %s81, %s83
      %p90 = scmp.eq.s32.totalorder %s40, 3
      %p91 = por %p89, %p90
      %p92 = scmp.ne.s32.totalorder %s83, %s84
      %p93 = scmp.eq.s32.totalorder %s40, 0
      %p94 = por %p92, %p93
      %p95 = scmp.ne.s32.totalorder %s83, %s84
      %p96 = scmp.eq.s32.totalorder %s41, 3
      %p97 = por %p95, %p96
      %p99 = scmp.ne.s32.totalorder %s84, %s98
      %p100 = scmp.eq.s32.totalorder %s41, 0
      %p101 = por %p99, %p100
      %s103 = sadd.s32 %s102, 1
      %p106 = scmp.eq.s32.totalorder %s35, 3
      %p107 = scmp.ne.s32.totalorder %s102, %s104
      %p108 = scmp.eq.s32.totalorder %s35, 0
      %p109 = por %p107, %p108
      %p110 = scmp.ne.s32.totalorder %s102, %s104
      %p111 = scmp.eq.s32.totalorder %s40, 3
      %p112 = por %p110, %p111
      %p113 = scmp.ne.s32.totalorder %s104, %s105
      %p114 = scmp.eq.s32.totalorder %s40, 0
      %p115 = por %p113, %p114
      %p116 = scmp.ne.s32.totalorder %s104, %s105
      %p117 = scmp.eq.s32.totalorder %s41, 3
      %p118 = por %p116, %p117
      %p120 = scmp.ne.s32.totalorder %s105, %s119
      %p121 = scmp.eq.s32.totalorder %s41, 0
      %p122 = por %p120, %p121
      %s124 = sadd.s32 %s123, 1
      %p127 = scmp.eq.s32.totalorder %s35, 3
      %p128 = scmp.ne.s32.totalorder %s123, %s125
      %p129 = scmp.eq.s32.totalorder %s35, 0
      %p130 = por %p128, %p129
      %p131 = scmp.ne.s32.totalorder %s123, %s125
      %p132 = scmp.eq.s32.totalorder %s40, 3
      %p133 = por %p131, %p132
      %p134 = scmp.ne.s32.totalorder %s125, %s126
      %p135 = scmp.eq.s32.totalorder %s40, 0
      %p136 = por %p134, %p135
      %p137 = scmp.ne.s32.totalorder %s125, %s126
      %p138 = scmp.eq.s32.totalorder %s41, 3
      %p139 = por %p137, %p138
      %p141 = scmp.ne.s32.totalorder %s126, %s140
      %p142 = scmp.eq.s32.totalorder %s41, 0
      %p143 = por %p141, %p142
      %s145 = sadd.s32 %s144, 1
      %p148 = scmp.eq.s32.totalorder %s35, 3
      %p149 = scmp.ne.s32.totalorder %s144, %s146
      %p150 = scmp.eq.s32.totalorder %s35, 0
      %p151 = por %p149, %p150
      %p152 = scmp.ne.s32.totalorder %s144, %s146
      %p153 = scmp.eq.s32.totalorder %s40, 3
      %p154 = por %p152, %p153
      %p155 = scmp.ne.s32.totalorder %s146, %s147
      %p156 = scmp.eq.s32.totalorder %s40, 0
      %p157 = por %p155, %p156
      %p158 = scmp.ne.s32.totalorder %s146, %s147
      %p159 = scmp.eq.s32.totalorder %s41, 3
      %p160 = por %p158, %p159
      %p162 = scmp.ne.s32.totalorder %s147, %s161
      %p163 = scmp.eq.s32.totalorder %s41, 0
      %p164 = por %p162, %p163
      %s165 = ssub.s32 %s42, %s54
      %p166 = scmp.eq.s32.totalorder %s165, 0
      %s168 = sadd.s32 %s167, 1
      %s169 = scalar_select %p166, %s167, %s168
      %p172 = pneg %p166
      %p173 = scmp.eq.s32.totalorder %s35, 3
      %p174 = por %p172, %p173
      %p175 = scmp.ne.s32.totalorder %s167, %s170
      %p176 = scmp.eq.s32.totalorder %s35, 0
      %p177 = por %p175, %p176
      %p178 = scmp.ne.s32.totalorder %s167, %s170
      %p179 = scmp.eq.s32.totalorder %s40, 3
      %p180 = por %p178, %p179
      %p181 = scmp.ne.s32.totalorder %s170, %s171
      %p182 = scmp.eq.s32.totalorder %s40, 0
      %p183 = por %p181, %p182
      %p184 = scmp.ne.s32.totalorder %s170, %s171
      %p185 = scmp.eq.s32.totalorder %s41, 3
      %p186 = por %p184, %p185
      %p188 = scmp.ne.s32.totalorder %s171, %s187
      %p189 = scmp.eq.s32.totalorder %s41, 0
      %p190 = por %p188, %p189
      %s191 = ssub.s32 %s43, %s50
      %p192 = scmp.eq.s32.totalorder %s191, 0
      %s194 = sadd.s32 %s193, 1
      %s195 = scalar_select %p192, %s193, %s194
      %p198 = pneg %p192
      %p199 = scmp.eq.s32.totalorder %s35, 3
      %p200 = por %p198, %p199
      %p201 = scmp.ne.s32.totalorder %s193, %s196
      %p202 = scmp.eq.s32.totalorder %s35, 0
      %p203 = por %p201, %p202
      %p204 = scmp.ne.s32.totalorder %s193, %s196
      %p205 = scmp.eq.s32.totalorder %s40, 3
      %p206 = por %p204, %p205
      %p207 = scmp.ne.s32.totalorder %s196, %s197
      %p208 = scmp.eq.s32.totalorder %s40, 0
      %p209 = por %p207, %p208
      %p210 = scmp.ne.s32.totalorder %s196, %s197
      %p211 = scmp.eq.s32.totalorder %s41, 3
      %p212 = por %p210, %p211
      %p214 = scmp.ne.s32.totalorder %s197, %s213
      %p215 = scmp.eq.s32.totalorder %s41, 0
      %p216 = por %p214, %p215
      %s217 = ssub.s32 %s43, %s50
      %p218 = scmp.eq.s32.totalorder %s217, 0
      %s220 = sadd.s32 %s219, 1
      %s221 = scalar_select %p218, %s219, %s220
      %p224 = pneg %p218
      %p225 = scmp.eq.s32.totalorder %s35, 3
      %p226 = por %p224, %p225
      %p227 = scmp.ne.s32.totalorder %s219, %s222
      %p228 = scmp.eq.s32.totalorder %s35, 0
      %p229 = por %p227, %p228
      %p230 = scmp.ne.s32.totalorder %s219, %s222
      %p231 = scmp.eq.s32.totalorder %s40, 3
      %p232 = por %p230, %p231
      %p233 = scmp.ne.s32.totalorder %s222, %s223
      %p234 = scmp.eq.s32.totalorder %s40, 0
      %p235 = por %p233, %p234
      %p236 = scmp.ne.s32.totalorder %s222, %s223
      %p237 = scmp.eq.s32.totalorder %s41, 3
      %p238 = por %p236, %p237
      %p240 = scmp.ne.s32.totalorder %s223, %s239
      %p241 = scmp.eq.s32.totalorder %s41, 0
      %p242 = por %p240, %p241
      %s243 = ssub.s32 %s43, %s50
      %p244 = scmp.eq.s32.totalorder %s243, 0
      %s246 = sadd.s32 %s245, 1
      %s247 = scalar_select %p244, %s245, %s246
      %p250 = pneg %p244
      %p251 = scmp.eq.s32.totalorder %s35, 3
      %p252 = por %p250, %p251
      %p253 = scmp.ne.s32.totalorder %s245, %s248
      %p254 = scmp.eq.s32.totalorder %s35, 0
      %p255 = por %p253, %p254
      %p256 = scmp.ne.s32.totalorder %s245, %s248
      %p257 = scmp.eq.s32.totalorder %s40, 3
      %p258 = por %p256, %p257
      %p259 = scmp.ne.s32.totalorder %s248, %s249
      %p260 = scmp.eq.s32.totalorder %s40, 0
      %p261 = por %p259, %p260
      %p262 = scmp.ne.s32.totalorder %s248, %s249
      %p263 = scmp.eq.s32.totalorder %s41, 3
      %p264 = por %p262, %p263
      %p266 = scmp.ne.s32.totalorder %s249, %s265
      %p267 = scmp.eq.s32.totalorder %s41, 0
      %p268 = por %p266, %p267
      %s269 = ssub.s32 %s43, %s50
      %p270 = scmp.eq.s32.totalorder %s269, 0
      %s272 = sadd.s32 %s271, 1
      %s273 = scalar_select %p270, %s271, %s272
      %p276 = pneg %p270
      %p277 = scmp.eq.s32.totalorder %s35, 3
      %p278 = por %p276, %p277
      %p279 = scmp.ne.s32.totalorder %s271, %s274
      %p280 = scmp.eq.s32.totalorder %s35, 0
      %p281 = por %p279, %p280
      %p282 = scmp.ne.s32.totalorder %s271, %s274
      %p283 = scmp.eq.s32.totalorder %s40, 3
      %p284 = por %p282, %p283
      %p285 = scmp.ne.s32.totalorder %s274, %s275
      %p286 = scmp.eq.s32.totalorder %s40, 0
      %p287 = por %p285, %p286
      %p288 = scmp.ne.s32.totalorder %s274, %s275
      %p289 = scmp.eq.s32.totalorder %s41, 3
      %p290 = por %p288, %p289
      %p292 = scmp.ne.s32.totalorder %s275, %s291
      %p293 = scmp.eq.s32.totalorder %s41, 0
      %p294 = por %p292, %p293
      %s295 = ssub.s32 %s43, %s50
      %p296 = scmp.eq.s32.totalorder %s295, 0
      %s298 = sadd.s32 %s297, 1
      %s299 = scalar_select %p296, %s297, %s298
      %p302 = pneg %p296
      %p303 = scmp.eq.s32.totalorder %s35, 3
      %p304 = por %p302, %p303
      %p305 = scmp.ne.s32.totalorder %s297, %s300
      %p306 = scmp.eq.s32.totalorder %s35, 0
      %p307 = por %p305, %p306
      %p308 = scmp.ne.s32.totalorder %s297, %s300
      %p309 = scmp.eq.s32.totalorder %s40, 3
      %p310 = por %p308, %p309
      %p311 = scmp.ne.s32.totalorder %s300, %s301
      %p312 = scmp.eq.s32.totalorder %s40, 0
      %p313 = por %p311, %p312
      %p314 = scmp.ne.s32.totalorder %s300, %s301
      %p315 = scmp.eq.s32.totalorder %s41, 3
      %p316 = por %p314, %p315
      %p318 = scmp.ne.s32.totalorder %s301, %s317
      %p319 = scmp.eq.s32.totalorder %s41, 0
      %p320 = por %p318, %p319
      %s321 = ssub.s32 %s43, %s50
      %p322 = scmp.eq.s32.totalorder %s321, 0
      %s324 = sadd.s32 %s323, 1
      %s325 = scalar_select %p322, %s323, %s324
      %p328 = pneg %p322
      %p329 = scmp.eq.s32.totalorder %s35, 3
      %p330 = por %p328, %p329
      %p331 = scmp.ne.s32.totalorder %s323, %s326
      %p332 = scmp.eq.s32.totalorder %s35, 0
      %p333 = por %p331, %p332
      %p334 = scmp.ne.s32.totalorder %s323, %s326
      %p335 = scmp.eq.s32.totalorder %s40, 3
      %p336 = por %p334, %p335
      %p337 = scmp.ne.s32.totalorder %s326, %s327
      %p338 = scmp.eq.s32.totalorder %s40, 0
      %p339 = por %p337, %p338
      %p340 = scmp.ne.s32.totalorder %s326, %s327
      %p341 = scmp.eq.s32.totalorder %s41, 3
      %p342 = por %p340, %p341
      %p344 = scmp.ne.s32.totalorder %s327, %s343
      %p345 = scmp.eq.s32.totalorder %s41, 0
      %p346 = por %p344, %p345
      %s347 = ssub.s32 %s43, %s50
      %p348 = scmp.eq.s32.totalorder %s347, 0
      %s350 = sadd.s32 %s349, 1
      %s351 = scalar_select %p348, %s349, %s350
      %p354 = pneg %p348
      %p355 = scmp.eq.s32.totalorder %s35, 3
      %p356 = por %p354, %p355
      %p357 = scmp.ne.s32.totalorder %s349, %s352
      %p358 = scmp.eq.s32.totalorder %s35, 0
      %p359 = por %p357, %p358
      %p360 = scmp.ne.s32.totalorder %s349, %s352
      %p361 = scmp.eq.s32.totalorder %s40, 3
      %p362 = por %p360, %p361
      %p363 = scmp.ne.s32.totalorder %s352, %s353
      %p364 = scmp.eq.s32.totalorder %s40, 0
      %p365 = por %p363, %p364
      %p366 = scmp.ne.s32.totalorder %s352, %s353
      %p367 = scmp.eq.s32.totalorder %s41, 3
      %p368 = por %p366, %p367
      %p370 = scmp.ne.s32.totalorder %s353, %s369
      %p371 = scmp.eq.s32.totalorder %s41, 0
      %p372 = por %p370, %p371
      %s373 = ssub.s32 %s43, %s50
      %p374 = scmp.eq.s32.totalorder %s373, 0
      %s376 = sadd.s32 %s375, 1
      %s377 = scalar_select %p374, %s375, %s376
      %p380 = pneg %p374
      %p381 = scmp.eq.s32.totalorder %s35, 3
      %p382 = por %p380, %p381
      %p383 = scmp.ne.s32.totalorder %s375, %s378
      %p384 = scmp.eq.s32.totalorder %s35, 0
      %p385 = por %p383, %p384
      %p386 = scmp.ne.s32.totalorder %s375, %s378
      %p387 = scmp.eq.s32.totalorder %s40, 3
      %p388 = por %p386, %p387
      %p389 = scmp.ne.s32.totalorder %s378, %s379
      %p390 = scmp.eq.s32.totalorder %s40, 0
      %p391 = por %p389, %p390
      %p392 = scmp.ne.s32.totalorder %s378, %s379
      %p393 = scmp.eq.s32.totalorder %s41, 3
      %p394 = por %p392, %p393
      %p396 = scmp.ne.s32.totalorder %s379, %s395
      %p397 = scmp.eq.s32.totalorder %s41, 0
      %p398 = por %p396, %p397
      %s399 = ssub.s32 %s43, %s50
      %p400 = scmp.eq.s32.totalorder %s399, 0
      %s402 = sadd.s32 %s401, 1
      %s403 = scalar_select %p400, %s401, %s402
      %p406 = pneg %p400
      %p407 = scmp.eq.s32.totalorder %s35, 3
      %p408 = por %p406, %p407
      %p409 = scmp.ne.s32.totalorder %s401, %s404
      %p410 = scmp.eq.s32.totalorder %s35, 0
      %p411 = por %p409, %p410
      %p412 = scmp.ne.s32.totalorder %s401, %s404
      %p413 = scmp.eq.s32.totalorder %s40, 3
      %p414 = por %p412, %p413
      %p415 = scmp.ne.s32.totalorder %s404, %s405
      %p416 = scmp.eq.s32.totalorder %s40, 0
      %p417 = por %p415, %p416
      %p418 = scmp.ne.s32.totalorder %s404, %s405
      %p419 = scmp.eq.s32.totalorder %s41, 3
      %p420 = por %p418, %p419
      %p422 = scmp.ne.s32.totalorder %s405, %s421
      %p423 = scmp.eq.s32.totalorder %s41, 0
      %p424 = por %p422, %p423
      %s425 = ssub.s32 %s43, %s50
      %p426 = scmp.eq.s32.totalorder %s425, 0
      %s428 = sadd.s32 %s427, 1
      %s429 = scalar_select %p426, %s427, %s428
      %p432 = pneg %p426
      %p433 = scmp.eq.s32.totalorder %s35, 3
      %p434 = por %p432, %p433
      %p435 = scmp.ne.s32.totalorder %s427, %s430
      %p436 = scmp.eq.s32.totalorder %s35, 0
      %p437 = por %p435, %p436
      %p438 = scmp.ne.s32.totalorder %s427, %s430
      %p439 = scmp.eq.s32.totalorder %s40, 3
      %p440 = por %p438, %p439
      %p441 = scmp.ne.s32.totalorder %s430, %s431
      %p442 = scmp.eq.s32.totalorder %s40, 0
      %p443 = por %p441, %p442
      %p444 = scmp.ne.s32.totalorder %s430, %s431
      %p445 = scmp.eq.s32.totalorder %s41, 3
      %p446 = por %p444, %p445
      %p448 = scmp.ne.s32.totalorder %s431, %s447
      %p449 = scmp.eq.s32.totalorder %s41, 0
      %p450 = por %p448, %p449
      %s451 = ssub.s32 %s43, %s50
      %p452 = scmp.eq.s32.totalorder %s451, 0
      %s454 = sadd.s32 %s453, 1
      %s455 = scalar_select %p452, %s453, %s454
      %p458 = pneg %p452
      %p459 = scmp.eq.s32.totalorder %s35, 3
      %p460 = por %p458, %p459
      %p461 = scmp.ne.s32.totalorder %s453, %s456
      %p462 = scmp.eq.s32.totalorder %s35, 0
      %p463 = por %p461, %p462
      %p464 = scmp.ne.s32.totalorder %s453, %s456
      %p465 = scmp.eq.s32.totalorder %s40, 3
      %p466 = por %p464, %p465
      %p467 = scmp.ne.s32.totalorder %s456, %s457
      %p468 = scmp.eq.s32.totalorder %s40, 0
      %p469 = por %p467, %p468
      %p470 = scmp.ne.s32.totalorder %s456, %s457
      %p471 = scmp.eq.s32.totalorder %s41, 3
      %p472 = por %p470, %p471
      %p474 = scmp.ne.s32.totalorder %s457, %s473
      %p475 = scmp.eq.s32.totalorder %s41, 0
      %p476 = por %p474, %p475
      %s477 = ssub.s32 %s43, %s50
      %p478 = scmp.eq.s32.totalorder %s477, 0
      %s480 = sadd.s32 %s479, 1
      %s481 = scalar_select %p478, %s479, %s480
      %p484 = pneg %p478
      %p485 = scmp.eq.s32.totalorder %s35, 3
      %p486 = por %p484, %p485
      %p487 = scmp.ne.s32.totalorder %s479, %s482
      %p488 = scmp.eq.s32.totalorder %s35, 0
      %p489 = por %p487, %p488
      %p490 = scmp.ne.s32.totalorder %s479, %s482
      %p491 = scmp.eq.s32.totalorder %s40, 3
      %p492 = por %p490, %p491
      %p493 = scmp.ne.s32.totalorder %s482, %s483
      %p494 = scmp.eq.s32.totalorder %s40, 0
      %p495 = por %p493, %p494
      %p496 = scmp.ne.s32.totalorder %s482, %s483
      %p497 = scmp.eq.s32.totalorder %s41, 3
      %p498 = por %p496, %p497
      %p500 = scmp.ne.s32.totalorder %s483, %s499
      %p501 = scmp.eq.s32.totalorder %s41, 0
      %p502 = por %p500, %p501
      %s503 = ssub.s32 %s42, %s54
      %p504 = scmp.eq.s32.totalorder %s503, 0
      %s506 = sadd.s32 %s505, 1
      %s507 = scalar_select %p504, %s505, %s506
      %p510 = pneg %p504
      %p511 = scmp.eq.s32.totalorder %s35, 3
      %p512 = por %p510, %p511
      %p513 = scmp.ne.s32.totalorder %s505, %s508
      %p514 = scmp.eq.s32.totalorder %s35, 0
      %p515 = por %p513, %p514
      %p516 = scmp.ne.s32.totalorder %s505, %s508
      %p517 = scmp.eq.s32.totalorder %s40, 3
      %p518 = por %p516, %p517
      %p519 = scmp.ne.s32.totalorder %s508, %s509
      %p520 = scmp.eq.s32.totalorder %s40, 0
      %p521 = por %p519, %p520
      %p522 = scmp.ne.s32.totalorder %s508, %s509
      %p523 = scmp.eq.s32.totalorder %s41, 3
      %p524 = por %p522, %p523
      %p526 = scmp.ne.s32.totalorder %s509, %s525
      %p527 = scmp.eq.s32.totalorder %s41, 0
      %p528 = por %p526, %p527
      %p529 = scmp.le.s32.totalorder 1, %s35
      %p530 = scmp.lt.s32.totalorder %s35, 5
      %p531 = pnand %p529, %p530
      %p532 = pneg %p531
      // Predicated region
      $region9: #{tpu_custom_call.1} parent=5 // pred_check
        _
      $region10: #{tpu_custom_call.1} parent=5 // pred_check_branch
        %534 = sbr.rel (%p531) target = $region12
      $region11: #{tpu_custom_call.1} parent=5 // pred_region
        %s535 = ssub.s32 %s35, 1
        // Predicated region
        $region13: #{tpu_custom_call.1} parent=11 // pred_check
          %p536 = pneg %p94
        $region14: #{tpu_custom_call.1} parent=11 // pred_check_branch
          %538 = sbr.rel (%p536) target = $region16
        $region15: #{tpu_custom_call.1} parent=11 // pred_region
          %540 = vsyncadd [#allocation5], 0
          %s542 = sshll.u32 %s1, 4
          %s543 = int_to_ptr.hbm [resolvable:$true] %s542
          %s544 = sshll.u32 [#allocation4], 4
          %s545 = int_to_ptr.vmem [resolvable:$true] %s544
          %547 = dma.hbm_to_vmem [thread:$0]  %s543, 128, %s545, [#allocation5]
        $region16: #{tpu_custom_call.1} parent=11 // pred_fallthru
          _
        // Predicated region
        $region17: #{tpu_custom_call.1} parent=11 // pred_check
          %p548 = pneg %p115
        $region18: #{tpu_custom_call.1} parent=11 // pred_check_branch
          %550 = sbr.rel (%p548) target = $region20
        $region19: #{tpu_custom_call.1} parent=11 // pred_region
          _
        $region20: #{tpu_custom_call.1} parent=11 // pred_fallthru
          _
        // Predicated region
        $region21: #{tpu_custom_call.1} parent=11 // pred_check
          %p551 = pneg %p136
        $region22: #{tpu_custom_call.1} parent=11 // pred_check_branch
          %553 = sbr.rel (%p551) target = $region24
        $region23: #{tpu_custom_call.1} parent=11 // pred_region
          %555 = vsyncadd [#allocation8], 0
          %s557 = sshll.u32 %s3, 4
          %s558 = int_to_ptr.hbm [resolvable:$true] %s557
          %s559 = sshll.u32 [#allocation7], 4
          %s560 = int_to_ptr.vmem [resolvable:$true] %s559
          %562 = dma.hbm_to_vmem [thread:$0]  %s558, 16, %s560, [#allocation8]
        $region24: #{tpu_custom_call.1} parent=11 // pred_fallthru
          _
        // Predicated region
        $region25: #{tpu_custom_call.1} parent=11 // pred_check
          %p563 = pneg %p157
        $region26: #{tpu_custom_call.1} parent=11 // pred_check_branch
          %565 = sbr.rel (%p563) target = $region28
        $region27: #{tpu_custom_call.1} parent=11 // pred_region
          %567 = vsyncadd [#allocation8], 0
          %s569 = sshll.u32 %s4, 4
          %s570 = int_to_ptr.hbm [resolvable:$true] %s569
          %s571 = sshll.u32 [#allocation9], 4
          %s572 = int_to_ptr.vmem [resolvable:$true] %s571
          %574 = dma.hbm_to_vmem [thread:$0]  %s570, 16, %s572, [#allocation8]
        $region28: #{tpu_custom_call.1} parent=11 // pred_fallthru
          _
      $region12: #{tpu_custom_call.1} parent=5 // pred_fallthru
        _
      %p575 = scmp.lt.s32.totalorder %s35, 4
      // Predicated region
      $region29: #{tpu_custom_call.1} parent=5 // pred_check
        %p576 = pneg %p575
      $region30: #{tpu_custom_call.1} parent=5 // pred_check_branch
        %578 = sbr.rel (%p576) target = $region32
      $region31: #{tpu_custom_call.1} parent=5 // pred_region
        // Predicated region
        $region33: #{tpu_custom_call.1} parent=31 // pred_check
          %p579 = pneg %p67
        $region34: #{tpu_custom_call.1} parent=31 // pred_check_branch
          %581 = sbr.rel (%p579) target = $region36
        $region35: #{tpu_custom_call.1} parent=31 // pred_region
          %s582 = smul.u32 2, %s42
          %p583 = scmp.lt.s32.totalorder %s582, 3
          %s584 = scalar_select %p583, %s582, 3
          %s585 = smul.addr %s584, 8
          %s586 = scalar_lea.vmem %s0, %s585
          %s587 = smul.u32 2, %s42
        $region36: #{tpu_custom_call.1} parent=31 // pred_fallthru
          _
        // Predicated region
        $region37: #{tpu_custom_call.1} parent=31 // pred_check
          %p588 = pneg %p177
        $region38: #{tpu_custom_call.1} parent=31 // pred_check_branch
          %590 = sbr.rel (%p588) target = $region40
        $region39: #{tpu_custom_call.1} parent=31 // pred_region
          %s591 = sand.u32 %s35, 1
          %s592 = scalar_lea.sflag [#allocation11], %s591
          %s593 = sand.u32 %s167, 1
          %s594 = smul.addr %s593, 2
          %s595 = scalar_lea.vmem [#allocation10], %s594
          %s596 = smul.u32 2, %s42
          %598 = vsyncadd %s592, 0
          %s599 = scalar_lea.hbm %s5, %s596
          %s600 = sshll.u32 %s599, 4
          %s601 = int_to_ptr.hbm [resolvable:$true] %s600
          %s602 = sshll.u32 %s595, 4
          %s603 = int_to_ptr.vmem [resolvable:$true] %s602
          %608 = dma.hbm_to_vmem [thread:$0]  %s601, 32, %s603, %s592, 16, 16, 1
        $region40: #{tpu_custom_call.1} parent=31 // pred_fallthru
          _
        // Predicated region
        $region41: #{tpu_custom_call.1} parent=31 // pred_check
          %p609 = pneg %p203
        $region42: #{tpu_custom_call.1} parent=31 // pred_check_branch
          %611 = sbr.rel (%p609) target = $region44
        $region43: #{tpu_custom_call.1} parent=31 // pred_region
          %p612 = scmp.lt.s32.totalorder %s43, 1
          %s613 = scalar_select %p612, %s43, 1
          %s614 = smul.addr %s613, 4
          %s615 = smul.addr %s614, 4
          %s616 = scalar_lea.vmem %s6, %s615
        $region44: #{tpu_custom_call.1} parent=31 // pred_fallthru
          _
        // Predicated region
        $region45: #{tpu_custom_call.1} parent=31 // pred_check
          %p617 = pneg %p229
        $region46: #{tpu_custom_call.1} parent=31 // pred_check_branch
          %619 = sbr.rel (%p617) target = $region48
        $region47: #{tpu_custom_call.1} parent=31 // pred_region
          %p620 = scmp.lt.s32.totalorder %s43, 1
          %s621 = scalar_select %p620, %s43, 1
          %s622 = scalar_lea.vmem %s7, %s621
        $region48: #{tpu_custom_call.1} parent=31 // pred_fallthru
          _
        // Predicated region
        $region49: #{tpu_custom_call.1} parent=31 // pred_check
          %p623 = pneg %p255
        $region50: #{tpu_custom_call.1} parent=31 // pred_check_branch
          %625 = sbr.rel (%p623) target = $region52
        $region51: #{tpu_custom_call.1} parent=31 // pred_region
          %p626 = scmp.lt.s32.totalorder %s43, 1
          %s627 = scalar_select %p626, %s43, 1
          %s628 = smul.addr %s627, 4
          %s629 = smul.addr %s628, 4
          %s630 = scalar_lea.vmem %s8, %s629
        $region52: #{tpu_custom_call.1} parent=31 // pred_fallthru
          _
        // Predicated region
        $region53: #{tpu_custom_call.1} parent=31 // pred_check
          %p631 = pneg %p281
        $region54: #{tpu_custom_call.1} parent=31 // pred_check_branch
          %633 = sbr.rel (%p631) target = $region56
        $region55: #{tpu_custom_call.1} parent=31 // pred_region
          %p634 = scmp.lt.s32.totalorder %s43, 1
          %s635 = scalar_select %p634, %s43, 1
          %s636 = scalar_lea.vmem %s9, %s635
        $region56: #{tpu_custom_call.1} parent=31 // pred_fallthru
          _
        // Predicated region
        $region57: #{tpu_custom_call.1} parent=31 // pred_check
          %p637 = pneg %p307
        $region58: #{tpu_custom_call.1} parent=31 // pred_check_branch
          %639 = sbr.rel (%p637) target = $region60
        $region59: #{tpu_custom_call.1} parent=31 // pred_region
          %p640 = scmp.lt.s32.totalorder %s43, 1
          %s641 = scalar_select %p640, %s43, 1
          %s642 = scalar_lea.vmem %s10, %s641
        $region60: #{tpu_custom_call.1} parent=31 // pred_fallthru
          _
        // Predicated region
        $region61: #{tpu_custom_call.1} parent=31 // pred_check
          %p643 = pneg %p333
        $region62: #{tpu_custom_call.1} parent=31 // pred_check_branch
          %645 = sbr.rel (%p643) target = $region64
        $region63: #{tpu_custom_call.1} parent=31 // pred_region
          %p646 = scmp.lt.s32.totalorder %s43, 1
          %s647 = scalar_select %p646, %s43, 1
          %s648 = scalar_lea.vmem %s11, %s647
        $region64: #{tpu_custom_call.1} parent=31 // pred_fallthru
          _
        // Predicated region
        $region65: #{tpu_custom_call.1} parent=31 // pred_check
          %p649 = pneg %p359
        $region66: #{tpu_custom_call.1} parent=31 // pred_check_branch
          %651 = sbr.rel (%p649) target = $region68
        $region67: #{tpu_custom_call.1} parent=31 // pred_region
          %s652 = sand.u32 %s35, 1
          %s653 = scalar_lea.sflag [#allocation11], %s652
          %s654 = sand.u32 %s349, 1
          %s655 = smul.addr %s654, 16
          %s656 = scalar_lea.vmem [#allocation12], %s655
          %658 = vsyncadd %s653, 0
          %s659 = smul.addr %s43, 4
          %s660 = smul.addr %s659, 4
          %s661 = scalar_lea.hbm %s12, %s660
          %s662 = sshll.u32 %s661, 4
          %s663 = int_to_ptr.hbm [resolvable:$true] %s662
          %s664 = sshll.u32 %s656, 4
          %s665 = int_to_ptr.vmem [resolvable:$true] %s664
          %670 = dma.hbm_to_vmem [thread:$0]  %s663, 256, %s665, %s653, 64, 64, 4
        $region68: #{tpu_custom_call.1} parent=31 // pred_fallthru
          _
        // Predicated region
        $region69: #{tpu_custom_call.1} parent=31 // pred_check
          %p671 = pneg %p385
        $region70: #{tpu_custom_call.1} parent=31 // pred_check_branch
          %673 = sbr.rel (%p671) target = $region72
        $region71: #{tpu_custom_call.1} parent=31 // pred_region
          %p674 = scmp.lt.s32.totalorder %s43, 1
          %s675 = scalar_select %p674, %s43, 1
          %s676 = scalar_lea.vmem %s13, %s675
        $region72: #{tpu_custom_call.1} parent=31 // pred_fallthru
          _
        // Predicated region
        $region73: #{tpu_custom_call.1} parent=31 // pred_check
          %p677 = pneg %p411
        $region74: #{tpu_custom_call.1} parent=31 // pred_check_branch
          %679 = sbr.rel (%p677) target = $region76
        $region75: #{tpu_custom_call.1} parent=31 // pred_region
          %p680 = scmp.lt.s32.totalorder %s43, 1
          %s681 = scalar_select %p680, %s43, 1
          %s682 = smul.addr %s681, 8
          %s683 = smul.addr %s682, 4
          %s684 = scalar_lea.vmem %s14, %s683
        $region76: #{tpu_custom_call.1} parent=31 // pred_fallthru
          _
        // Predicated region
        $region77: #{tpu_custom_call.1} parent=31 // pred_check
          %p685 = pneg %p437
        $region78: #{tpu_custom_call.1} parent=31 // pred_check_branch
          %687 = sbr.rel (%p685) target = $region80
        $region79: #{tpu_custom_call.1} parent=31 // pred_region
          %p688 = scmp.lt.s32.totalorder %s43, 1
          %s689 = scalar_select %p688, %s43, 1
          %s690 = scalar_lea.vmem %s15, %s689
        $region80: #{tpu_custom_call.1} parent=31 // pred_fallthru
          _
        // Predicated region
        $region81: #{tpu_custom_call.1} parent=31 // pred_check
          %p691 = pneg %p463
        $region82: #{tpu_custom_call.1} parent=31 // pred_check_branch
          %693 = sbr.rel (%p691) target = $region84
        $region83: #{tpu_custom_call.1} parent=31 // pred_region
          %p694 = scmp.lt.s32.totalorder %s43, 1
          %s695 = scalar_select %p694, %s43, 1
          %s696 = scalar_lea.vmem %s16, %s695
        $region84: #{tpu_custom_call.1} parent=31 // pred_fallthru
          _
        // Predicated region
        $region85: #{tpu_custom_call.1} parent=31 // pred_check
          %p697 = pneg %p489
        $region86: #{tpu_custom_call.1} parent=31 // pred_check_branch
          %699 = sbr.rel (%p697) target = $region88
        $region87: #{tpu_custom_call.1} parent=31 // pred_region
          %s700 = sand.u32 %s479, 1
          %s701 = scalar_lea.sflag [#allocation14], %s700
          %s702 = sand.u32 %s479, 1
          %s703 = scalar_lea.vmem [#allocation13], %s702
          %705 = vsyncadd %s701, 0
          %s706 = scalar_lea.hbm %s17, %s43
          %s708 = sshll.u32 %s706, 4
          %s709 = int_to_ptr.hbm [resolvable:$true] %s708
          %s710 = sshll.u32 %s703, 4
          %s711 = int_to_ptr.vmem [resolvable:$true] %s710
          %713 = dma.hbm_to_vmem [thread:$0]  %s709, 16, %s711, %s701
        $region88: #{tpu_custom_call.1} parent=31 // pred_fallthru
          _
      $region32: #{tpu_custom_call.1} parent=5 // pred_fallthru
        _
      %p714 = scmp.le.s32.totalorder 1, %s35
      %p715 = scmp.lt.s32.totalorder %s35, 5
      %p716 = pnand %p714, %p715
      %p717 = pneg %p716
      // Predicated region
      $region89: #{tpu_custom_call.1} parent=5 // pred_check
        _
      $region90: #{tpu_custom_call.1} parent=5 // pred_check_branch
        %719 = sbr.rel (%p716) target = $region92
      $region91: #{tpu_custom_call.1} parent=5 // pred_region
        %s720 = ssub.s32 %s35, 1
        // Predicated region
        $region93: #{tpu_custom_call.1} parent=91 // pred_check
          %p721 = pneg %p94
        $region94: #{tpu_custom_call.1} parent=91 // pred_check_branch
          %723 = sbr.rel (%p721) target = $region96
        $region95: #{tpu_custom_call.1} parent=91 // pred_region
          %725 = dma.done [#allocation5], 128
        $region96: #{tpu_custom_call.1} parent=91 // pred_fallthru
          _
        // Predicated region
        $region97: #{tpu_custom_call.1} parent=91 // pred_check
          %p726 = pneg %p136
        $region98: #{tpu_custom_call.1} parent=91 // pred_check_branch
          %728 = sbr.rel (%p726) target = $region100
        $region99: #{tpu_custom_call.1} parent=91 // pred_region
          %730 = dma.done [#allocation8], 16
        $region100: #{tpu_custom_call.1} parent=91 // pred_fallthru
          _
        // Predicated region
        $region101: #{tpu_custom_call.1} parent=91 // pred_check
          %p731 = pneg %p157
        $region102: #{tpu_custom_call.1} parent=91 // pred_check_branch
          %733 = sbr.rel (%p731) target = $region104
        $region103: #{tpu_custom_call.1} parent=91 // pred_region
          %735 = dma.done [#allocation8], 16
        $region104: #{tpu_custom_call.1} parent=91 // pred_fallthru
          _
        %s736 = sand.u32 %s40, 1
        %s737 = scalar_lea.sflag [#allocation11], %s736
        %s738 = sand.u32 %s170, 1
        %s739 = smul.addr %s738, 2
        %s740 = scalar_lea.vmem [#allocation10], %s739
        // Predicated region
        $region105: #{tpu_custom_call.1} parent=91 // pred_check
          %p741 = pneg %p183
        $region106: #{tpu_custom_call.1} parent=91 // pred_check_branch
          %743 = sbr.rel (%p741) target = $region108
        $region107: #{tpu_custom_call.1} parent=91 // pred_region
          %745 = dma.done %s737, 32
        $region108: #{tpu_custom_call.1} parent=91 // pred_fallthru
          _
        %s746 = sand.u32 %s40, 1
        %s747 = scalar_lea.sflag [#allocation11], %s746
        %s748 = sand.u32 %s352, 1
        %s749 = smul.addr %s748, 16
        %s750 = scalar_lea.vmem [#allocation12], %s749
        // Predicated region
        $region109: #{tpu_custom_call.1} parent=91 // pred_check
          %p751 = pneg %p365
        $region110: #{tpu_custom_call.1} parent=91 // pred_check_branch
          %753 = sbr.rel (%p751) target = $region112
        $region111: #{tpu_custom_call.1} parent=91 // pred_region
          %755 = dma.done %s747, 256
        $region112: #{tpu_custom_call.1} parent=91 // pred_fallthru
          _
        %s756 = sand.u32 %s482, 1
        %s757 = scalar_lea.sflag [#allocation14], %s756
        %s758 = sand.u32 %s482, 1
        %s759 = scalar_lea.vmem [#allocation13], %s758
        // Predicated region
        $region113: #{tpu_custom_call.1} parent=91 // pred_check
          %p760 = pneg %p495
        $region114: #{tpu_custom_call.1} parent=91 // pred_check_branch
          %762 = sbr.rel (%p760) target = $region116
        $region115: #{tpu_custom_call.1} parent=91 // pred_region
          %764 = dma.done %s757, 16
        $region116: #{tpu_custom_call.1} parent=91 // pred_fallthru
          _
        %s765 = smul.u32 2, %s44
        %p766 = scmp.lt.s32.totalorder %s765, 3
        %s767 = scalar_select %p766, %s765, 3
        %s768 = smul.addr %s767, 8
        %s769 = scalar_lea.vmem %s0, %s768
        %p770 = pneg %p73
        %p771 = pneg %p70
        %p772 = pneg %p94
        %p773 = pneg %p91
        %p774 = pneg %p115
        %p775 = pneg %p112
        %p776 = pneg %p136
        %p777 = pneg %p133
        %p778 = pneg %p157
        %p779 = pneg %p154
        %s780 = sand.u32 %s40, 1
        %s781 = scalar_lea.sflag [#allocation11], %s780
        %s782 = sand.u32 %s170, 1
        %s783 = smul.addr %s782, 2
        %s784 = scalar_lea.vmem [#allocation10], %s783
        %p785 = pneg %p183
        %p786 = pneg %p180
        %p787 = scmp.lt.s32.totalorder %s45, 1
        %s788 = scalar_select %p787, %s45, 1
        %s789 = smul.addr %s788, 4
        %s790 = smul.addr %s789, 4
        %s791 = scalar_lea.vmem %s6, %s790
        %p792 = pneg %p209
        %p793 = pneg %p206
        %p794 = scmp.lt.s32.totalorder %s45, 1
        %s795 = scalar_select %p794, %s45, 1
        %s796 = scalar_lea.vmem %s7, %s795
        %p797 = pneg %p235
        %p798 = pneg %p232
        %p799 = scmp.lt.s32.totalorder %s45, 1
        %s800 = scalar_select %p799, %s45, 1
        %s801 = smul.addr %s800, 4
        %s802 = smul.addr %s801, 4
        %s803 = scalar_lea.vmem %s8, %s802
        %p804 = pneg %p261
        %p805 = pneg %p258
        %p806 = scmp.lt.s32.totalorder %s45, 1
        %s807 = scalar_select %p806, %s45, 1
        %s808 = scalar_lea.vmem %s9, %s807
        %p809 = pneg %p287
        %p810 = pneg %p284
        %p811 = scmp.lt.s32.totalorder %s45, 1
        %s812 = scalar_select %p811, %s45, 1
        %s813 = scalar_lea.vmem %s10, %s812
        %p814 = pneg %p313
        %p815 = pneg %p310
        %p816 = scmp.lt.s32.totalorder %s45, 1
        %s817 = scalar_select %p816, %s45, 1
        %s818 = scalar_lea.vmem %s11, %s817
        %p819 = pneg %p339
        %p820 = pneg %p336
        %s821 = sand.u32 %s40, 1
        %s822 = scalar_lea.sflag [#allocation11], %s821
        %s823 = sand.u32 %s352, 1
        %s824 = smul.addr %s823, 16
        %s825 = scalar_lea.vmem [#allocation12], %s824
        %p826 = pneg %p365
        %p827 = pneg %p362
        %p828 = scmp.lt.s32.totalorder %s45, 1
        %s829 = scalar_select %p828, %s45, 1
        %s830 = scalar_lea.vmem %s13, %s829
        %p831 = pneg %p391
        %p832 = pneg %p388
        %p833 = scmp.lt.s32.totalorder %s45, 1
        %s834 = scalar_select %p833, %s45, 1
        %s835 = smul.addr %s834, 8
        %s836 = smul.addr %s835, 4
        %s837 = scalar_lea.vmem %s14, %s836
        %p838 = pneg %p417
        %p839 = pneg %p414
        %p840 = scmp.lt.s32.totalorder %s45, 1
        %s841 = scalar_select %p840, %s45, 1
        %s842 = scalar_lea.vmem %s15, %s841
        %p843 = pneg %p443
        %p844 = pneg %p440
        %p845 = scmp.lt.s32.totalorder %s45, 1
        %s846 = scalar_select %p845, %s45, 1
        %s847 = scalar_lea.vmem %s16, %s846
        %p848 = pneg %p469
        %p849 = pneg %p466
        %s850 = sand.u32 %s482, 1
        %s851 = scalar_lea.sflag [#allocation14], %s850
        %s852 = sand.u32 %s482, 1
        %s853 = scalar_lea.vmem [#allocation13], %s852
        %p854 = pneg %p495
        %p855 = pneg %p492
        %p856 = pneg %p521
        %p857 = pneg %p518
        %s858 = sand.u32 %s508, 1
        %s859 = scalar_lea.sflag [#allocation6], %s858
        %s860 = sand.u32 %s508, 1
        %s861 = smul.addr %s860, 16
        %s862 = scalar_lea.vmem [#allocation15], %s861
        %s863 = smul.u32 2, %s44
        %p864 = scmp.lt.s32.totalorder %s863, 3
        %s865 = scalar_select %p864, %s863, 3
        %s866 = smul.addr %s865, 8
        %s867 = scalar_lea.vmem %s0, %s866
        %s868 = smul.u32 2, %s44
        %s869 = smul.u32 2, %s44
        %p870 = scmp.lt.s32.totalorder %s45, 1
        %s871 = scalar_select %p870, %s45, 1
        %s872 = smul.addr %s871, 4
        %s873 = smul.addr %s872, 4
        %s874 = scalar_lea.vmem %s6, %s873
        %p875 = scmp.lt.s32.totalorder %s45, 1
        %s876 = scalar_select %p875, %s45, 1
        %s877 = scalar_lea.vmem %s7, %s876
        %p878 = scmp.lt.s32.totalorder %s45, 1
        %s879 = scalar_select %p878, %s45, 1
        %s880 = smul.addr %s879, 4
        %s881 = smul.addr %s880, 4
        %s882 = scalar_lea.vmem %s8, %s881
        %p883 = scmp.lt.s32.totalorder %s45, 1
        %s884 = scalar_select %p883, %s45, 1
        %s885 = scalar_lea.vmem %s9, %s884
        %p886 = scmp.lt.s32.totalorder %s45, 1
        %s887 = scalar_select %p886, %s45, 1
        %s888 = scalar_lea.vmem %s10, %s887
        %p889 = scmp.lt.s32.totalorder %s45, 1
        %s890 = scalar_select %p889, %s45, 1
        %s891 = scalar_lea.vmem %s11, %s890
        %p892 = scmp.lt.s32.totalorder %s45, 1
        %s893 = scalar_select %p892, %s45, 1
        %s894 = scalar_lea.vmem %s13, %s893
        %p895 = scmp.lt.s32.totalorder %s45, 1
        %s896 = scalar_select %p895, %s45, 1
        %s897 = smul.addr %s896, 8
        %s898 = smul.addr %s897, 4
        %s899 = scalar_lea.vmem %s14, %s898
        %p900 = scmp.lt.s32.totalorder %s45, 1
        %s901 = scalar_select %p900, %s45, 1
        %s902 = scalar_lea.vmem %s15, %s901
        %p903 = scmp.lt.s32.totalorder %s45, 1
        %s904 = scalar_select %p903, %s45, 1
        %s905 = scalar_lea.vmem %s16, %s904
        %s906 = smul.u32 2, %s44
        %p908 = scmp.eq.s32.totalorder %s45, 0
        // Predicated region
        $region117: #{tpu_custom_call.1} parent=91 // pred_check
          %p909 = pneg %p908
        $region118: #{tpu_custom_call.1} parent=91 // pred_check_branch
          %911 = sbr.rel (%p909) target = $region120
        $region119: #{tpu_custom_call.1} parent=91 // pred_region
          %v912 = vld [vmem:[%s867] sm:$0xff]
          %v913 = vld [vmem:[%s867 + $0x8] sm:$0xff]
          %v914 = vld [vmem:[#allocation4] sm:$0xff]
          %v915 = vadd.f32 %v912, %v914
          %v916 = vadd.f32 %v913, %v914
          %v917 = vld [vmem:[%s2] sm:$0x1]
          %v919 = vperm.slane %v917, 0
          %v921 = vadd.f32 %v915, %v919
          %v922 = vadd.f32 %v916, %v919
          %v923 = vld [vmem:[#allocation7] sm:$0x1]
          %v924 = vld [vmem:[#allocation9] sm:$0x1]
          %vm925 = vcmask 261120
          %v926 = vsel %vm925, %v921, 0.0
          %927 = vadd.xlane.f32.xlu0 %v926
          %v928 = vpop.xlane.xlu0 %927
          %v929 = vsel %vm925, %v922, 0.0
          %930 = vadd.xlane.f32.xlu0 %v929
          %v931 = vpop.xlane.xlu0 %930
          %v932 = vrcp.pop 32.0
          %v933 = vmul.f32 32.0, %v932
          %v934 = vsub.f32 1.0, %v933
          %v935 = vmul.f32 %v932, %v934
          %v936 = vadd.f32 %v932, %v935
          %vm937 = vweird.f32 %v932
          %v938 = vsel %vm937, %v932, %v936
          %v939 = vmul.f32 %v928, %v938
          %v940 = vmul.f32 %v931, %v938
          %v941 = vsub.f32 %v921, %v939
          %v942 = vsub.f32 %v922, %v940
          %v943 = vmul.f32 %v941, %v941
          %v944 = vmul.f32 %v942, %v942
          %v945 = vsel %vm925, %v943, 0.0
          %946 = vadd.xlane.f32.xlu0 %v945
          %v947 = vpop.xlane.xlu0 %946
          %v948 = vsel %vm925, %v944, 0.0
          %949 = vadd.xlane.f32.xlu0 %v948
          %v950 = vpop.xlane.xlu0 %949
          %v951 = vmul.f32 %v947, %v938
          %v952 = vmul.f32 %v950, %v938
          %v953 = vadd.f32 %v951, 1e-12
          %v954 = vadd.f32 %v952, 1e-12
          %v955 = vrsqrt.pop %v953
          %v956 = vmul.f32 %v955, %v953
          %v957 = vmul.f32 %v956, %v955
          %v958 = vmul.f32 0.5, %v957
          %v959 = vsub.f32 1.5, %v958
          %v960 = vmul.f32 %v955, %v959
          %vm961 = vweird.f32 %v953
          %vm962 = vweird.f32 %v955
          %vm963 = vmor %vm961, %vm962
          %v964 = vsel %vm963, %v955, %v960
          %v965 = vrsqrt.pop %v954
          %v966 = vmul.f32 %v965, %v954
          %v967 = vmul.f32 %v966, %v965
          %v968 = vmul.f32 0.5, %v967
          %v969 = vsub.f32 1.5, %v968
          %v970 = vmul.f32 %v965, %v969
          %vm971 = vweird.f32 %v954
          %vm972 = vweird.f32 %v965
          %vm973 = vmor %vm971, %vm972
          %v974 = vsel %vm973, %v965, %v970
          %v975 = vmul.f32 %v941, %v964
          %v976 = vmul.f32 %v942, %v974
          %v978 = vperm.slane %v923, 0
          %v980 = vmul.f32 %v978, %v975
          %v981 = vmul.f32 %v978, %v976
          %v983 = vperm.slane %v924, 0
          %v985 = vadd.f32 %v980, %v983
          %v986 = vadd.f32 %v981, %v983
          %987 = vst.msk [vmem:[#allocation2] sm:$0xff] %vm925, %v985
          %988 = vst.msk [vmem:[#allocation2 + $0x8] sm:$0xff] %vm925, %v986
        $region120: #{tpu_custom_call.1} parent=91 // pred_fallthru
          _
        %v989 = vld [vmem:[#allocation2] sm:$0xff]
        %v990 = vld [vmem:[#allocation2 + $0x8] sm:$0xff]
        %v991 = vpack.c.bf16 %v990, %v989
        %v992 = vld [vmem:[%s874] sm:$0xf]
        %v993 = vld [vmem:[%s874 + $0x4] sm:$0xf]
        %v994 = vld [vmem:[%s874 + $0x8] sm:$0xf]
        %v995 = vld [vmem:[%s874 + $0xc] sm:$0xf]
        %v996 = vld [vmem:[%s877] sm:$0x1]
        %v998 = vperm.slane %v996, 0
        %v1004 = vunpack.c.l.b16 %v992
        %v1005 = vunpack.c.l.b16 %v993
        %v1006 = vunpack.c.l.b16 %v994
        %v1007 = vunpack.c.l.b16 %v995
        %v1008 = vpack.c.b16 %v1005, %v1004
        %v1009 = vpack.c.b16 %v1007, %v1006
        %vm1012 = vcmask 261120
        %v1014 = vsel %vm1012, %v991, 0
        %1016 = vmatpush.bf16.msra.mxu0 0
        %1017 = vmatpush.bf16.msra.mxu0 0
        %1018 = vmatpush.bf16.msra.mxu0 0
        %1019 = vmatpush.bf16.msra.mxu0 0
        %1020 = vmatpush.bf16.msra.mxu0 0
        %1021 = vmatpush.bf16.msra.mxu0 0
        %1022 = vmatpush.bf16.msra.mxu0 %v1009
        %1023 = vmatpush.bf16.msra.mxu0 %v1008
        %1024 = vmatmul.bf16.gmra.mxu0 %v1014
        %v1025 = vpop.f32.mrf.mxu0
        %v1026 = vadd.f32 %v998, %v1025
        %v1027 = vpop.f32.mrf.mxu0
        %v1028 = vadd.f32 %v998, %v1027
        %1029 = vdwg.mxu0
        %v1030 = vpack.c.bf16 %v1026, %v1026
        %v1031 = vpack.c.bf16 %v1028, %v1028
        %v1032 = vld [vmem:[%s740] sm:$0x1]
        %v1034 = vperm.slane %v1032, 0
        %v1037 = vunpack.c.l.b16 %v1030
        %v1038 = vpack.c.b16 %v1037, %v1037
        %1039 = vrot.lane.b32.xlu0 %v1038, 96
        %v1040 = vpop.permute.xlu0 %1039
        %vm1041 = vcmask 64512
        %v1043 = vsel %vm1041, %v1030, 0
        %v1046 = vsel %vm1041, %v1040, 0
        %1048 = vmatpush.bf16.xpose.msra.mxu0 0
        %1049 = vmatpush.bf16.xpose.msra.mxu0 0
        %1050 = vmatpush.bf16.xpose.msra.mxu0 0
        %1051 = vmatpush.bf16.xpose.msra.mxu0 0
        %1052 = vmatpush.bf16.xpose.msra.mxu0 0
        %1053 = vmatpush.bf16.xpose.msra.mxu0 0
        %1054 = vmatpush.bf16.xpose.msra.mxu0 0
        %1055 = vmatpush.bf16.xpose.msra.mxu0 %v1046
        %1056 = vmatmul.bf16.gmra.mxu0 %v1043
        %v1057 = vpop.f32.mrf.mxu0
        %v1058 = vadd.f32 0.0, %v1057
        %v1059 = vpop.f32.mrf.mxu0
        %1060 = vdwg.mxu0
        %v1061 = vmul.f32 %v1058, 0.35355338
        %v1062 = vadd.f32 %v1061, %v1034
        %v1063 = vsel %vm1041, %v1062, -inf
        %1064 = vmax.xlane.f32.xlu0 %v1063
        %v1065 = vpop.xlane.xlu0 %1064
        %v1066 = vsub.f32 %v1062, %v1065
        %v1067 = vmul.f32 %v1066, 1.442695
        %v1068 = vpow.pop %v1067
        %v1069 = vsel %vm1041, %v1068, 0.0
        %1070 = vadd.xlane.f32.xlu0 %v1069
        %v1071 = vpop.xlane.xlu0 %1070
        %v1072 = vrcp.pop %v1071
        %v1073 = vmul.f32 %v1068, %v1072
        %v1074 = vpack.c.bf16 %v1073, %v1073
        %1075 = vrot.lane.b32.xlu0 %v1038, 64
        %v1076 = vpop.permute.xlu0 %1075
        %v1078 = vsel %vm1041, %v1074, 0
        %vm1080 = vcmask 1043456
        %v1082 = vsel %vm1080, %v1076, 0
        %1084 = vmatpush.bf16.msra.mxu0 0
        %1085 = vmatpush.bf16.msra.mxu0 0
        %1086 = vmatpush.bf16.msra.mxu0 0
        %1087 = vmatpush.bf16.msra.mxu0 0
        %1088 = vmatpush.bf16.msra.mxu0 0
        %1089 = vmatpush.bf16.msra.mxu0 0
        %1090 = vmatpush.bf16.msra.mxu0 0
        %1091 = vmatpush.bf16.msra.mxu0 %v1082
        %1092 = vmatmul.bf16.gmra.mxu0 %v1078
        %v1093 = vpop.f32.mrf.mxu0
        %v1094 = vadd.f32 0.0, %v1093
        %v1095 = vpop.f32.mrf.mxu0
        %1096 = vdwg.mxu0
        %v1097 = vpack.c.bf16 %v1094, %v1094
        %vm1098 = vcmask 60416
        %1099 = vst.msk [vmem:[#allocation3] sm:$0xf] %vm1098, %v1097
        %1100 = vrot.lane.b32.xlu0 %v1038, 120
        %v1101 = vpop.permute.xlu0 %1100
        %1102 = vrot.lane.b32.xlu0 %v1038, 88
        %v1103 = vpop.permute.xlu0 %1102
        %v1105 = vsel %vm1041, %v1101, 0
        %v1108 = vsel %vm1041, %v1103, 0
        %1110 = vmatpush.bf16.xpose.msra.mxu0 0
        %1111 = vmatpush.bf16.xpose.msra.mxu0 0
        %1112 = vmatpush.bf16.xpose.msra.mxu0 0
        %1113 = vmatpush.bf16.xpose.msra.mxu0 0
        %1114 = vmatpush.bf16.xpose.msra.mxu0 0
        %1115 = vmatpush.bf16.xpose.msra.mxu0 0
        %1116 = vmatpush.bf16.xpose.msra.mxu0 0
        %1117 = vmatpush.bf16.xpose.msra.mxu0 %v1108
        %1118 = vmatmul.bf16.gmra.mxu0 %v1105
        %v1119 = vpop.f32.mrf.mxu0
        %v1120 = vadd.f32 0.0, %v1119
        %v1121 = vpop.f32.mrf.mxu0
        %1122 = vdwg.mxu0
        %v1123 = vmul.f32 %v1120, 0.35355338
        %v1124 = vadd.f32 %v1123, %v1034
        %v1125 = vsel %vm1041, %v1124, -inf
        %1126 = vmax.xlane.f32.xlu0 %v1125
        %v1127 = vpop.xlane.xlu0 %1126
        %v1128 = vsub.f32 %v1124, %v1127
        %v1129 = vmul.f32 %v1128, 1.442695
        %v1130 = vpow.pop %v1129
        %v1131 = vsel %vm1041, %v1130, 0.0
        %1132 = vadd.xlane.f32.xlu0 %v1131
        %v1133 = vpop.xlane.xlu0 %1132
        %v1134 = vrcp.pop %v1133
        %v1135 = vmul.f32 %v1130, %v1134
        %v1136 = vpack.c.bf16 %v1135, %v1135
        %1137 = vrot.lane.b32.xlu0 %v1038, 56
        %v1138 = vpop.permute.xlu0 %1137
        %v1140 = vsel %vm1041, %v1136, 0
        %v1143 = vsel %vm1080, %v1138, 0
        %1145 = vmatpush.bf16.msra.mxu0 0
        %1146 = vmatpush.bf16.msra.mxu0 0
        %1147 = vmatpush.bf16.msra.mxu0 0
        %1148 = vmatpush.bf16.msra.mxu0 0
        %1149 = vmatpush.bf16.msra.mxu0 0
        %1150 = vmatpush.bf16.msra.mxu0 0
        %1151 = vmatpush.bf16.msra.mxu0 0
        %1152 = vmatpush.bf16.msra.mxu0 %v1143
        %1153 = vmatmul.bf16.gmra.mxu0 %v1140
        %v1154 = vpop.f32.mrf.mxu0
        %v1155 = vadd.f32 0.0, %v1154
        %v1156 = vpop.f32.mrf.mxu0
        %1157 = vdwg.mxu0
        %v1158 = vpack.c.bf16 %v1155, %v1155
        %1160 = vrot.lane.b32.xlu0 %v1158, 8
        %v1161 = vpop.permute.xlu0 %1160
        %vm1163 = vcmask 126016
        %1164 = vst.msk [vmem:[#allocation3] sm:$0xf] %vm1163, %v1161
        %1165 = vrot.lane.b32.xlu0 %v1038, 112
        %v1166 = vpop.permute.xlu0 %1165
        %1167 = vrot.lane.b32.xlu0 %v1038, 80
        %v1168 = vpop.permute.xlu0 %1167
        %v1170 = vsel %vm1041, %v1166, 0
        %v1173 = vsel %vm1041, %v1168, 0
        %1175 = vmatpush.bf16.xpose.msra.mxu0 0
        %1176 = vmatpush.bf16.xpose.msra.mxu0 0
        %1177 = vmatpush.bf16.xpose.msra.mxu0 0
        %1178 = vmatpush.bf16.xpose.msra.mxu0 0
        %1179 = vmatpush.bf16.xpose.msra.mxu0 0
        %1180 = vmatpush.bf16.xpose.msra.mxu0 0
        %1181 = vmatpush.bf16.xpose.msra.mxu0 0
        %1182 = vmatpush.bf16.xpose.msra.mxu0 %v1173
        %1183 = vmatmul.bf16.gmra.mxu0 %v1170
        %v1184 = vpop.f32.mrf.mxu0
        %v1185 = vadd.f32 0.0, %v1184
        %v1186 = vpop.f32.mrf.mxu0
        %1187 = vdwg.mxu0
        %v1188 = vmul.f32 %v1185, 0.35355338
        %v1189 = vadd.f32 %v1188, %v1034
        %v1190 = vsel %vm1041, %v1189, -inf
        %1191 = vmax.xlane.f32.xlu0 %v1190
        %v1192 = vpop.xlane.xlu0 %1191
        %v1193 = vsub.f32 %v1189, %v1192
        %v1194 = vmul.f32 %v1193, 1.442695
        %v1195 = vpow.pop %v1194
        %v1196 = vsel %vm1041, %v1195, 0.0
        %1197 = vadd.xlane.f32.xlu0 %v1196
        %v1198 = vpop.xlane.xlu0 %1197
        %v1199 = vrcp.pop %v1198
        %v1200 = vmul.f32 %v1195, %v1199
        %v1201 = vpack.c.bf16 %v1200, %v1200
        %1202 = vrot.lane.b32.xlu0 %v1038, 48
        %v1203 = vpop.permute.xlu0 %1202
        %v1205 = vsel %vm1041, %v1201, 0
        %v1208 = vsel %vm1080, %v1203, 0
        %1210 = vmatpush.bf16.msra.mxu0 0
        %1211 = vmatpush.bf16.msra.mxu0 0
        %1212 = vmatpush.bf16.msra.mxu0 0
        %1213 = vmatpush.bf16.msra.mxu0 0
        %1214 = vmatpush.bf16.msra.mxu0 0
        %1215 = vmatpush.bf16.msra.mxu0 0
        %1216 = vmatpush.bf16.msra.mxu0 0
        %1217 = vmatpush.bf16.msra.mxu0 %v1208
        %1218 = vmatmul.bf16.gmra.mxu0 %v1205
        %v1219 = vpop.f32.mrf.mxu0
        %v1220 = vadd.f32 0.0, %v1219
        %v1221 = vpop.f32.mrf.mxu0
        %1222 = vdwg.mxu0
        %v1223 = vpack.c.bf16 %v1220, %v1220
        %1225 = vrot.lane.b32.xlu0 %v1223, 16
        %v1226 = vpop.permute.xlu0 %1225
        %vm1228 = vcmask 191616
        %1229 = vst.msk [vmem:[#allocation3] sm:$0xf] %vm1228, %v1226
        %1230 = vrot.lane.b32.xlu0 %v1038, 104
        %v1231 = vpop.permute.xlu0 %1230
        %1232 = vrot.lane.b32.xlu0 %v1038, 72
        %v1233 = vpop.permute.xlu0 %1232
        %v1235 = vsel %vm1041, %v1231, 0
        %v1238 = vsel %vm1041, %v1233, 0
        %1240 = vmatpush.bf16.xpose.msra.mxu0 0
        %1241 = vmatpush.bf16.xpose.msra.mxu0 0
        %1242 = vmatpush.bf16.xpose.msra.mxu0 0
        %1243 = vmatpush.bf16.xpose.msra.mxu0 0
        %1244 = vmatpush.bf16.xpose.msra.mxu0 0
        %1245 = vmatpush.bf16.xpose.msra.mxu0 0
        %1246 = vmatpush.bf16.xpose.msra.mxu0 0
        %1247 = vmatpush.bf16.xpose.msra.mxu0 %v1238
        %1248 = vmatmul.bf16.gmra.mxu0 %v1235
        %v1249 = vpop.f32.mrf.mxu0
        %v1250 = vadd.f32 0.0, %v1249
        %v1251 = vpop.f32.mrf.mxu0
        %1252 = vdwg.mxu0
        %v1253 = vmul.f32 %v1250, 0.35355338
        %v1254 = vadd.f32 %v1253, %v1034
        %v1255 = vsel %vm1041, %v1254, -inf
        %1256 = vmax.xlane.f32.xlu0 %v1255
        %v1257 = vpop.xlane.xlu0 %1256
        %v1258 = vsub.f32 %v1254, %v1257
        %v1259 = vmul.f32 %v1258, 1.442695
        %v1260 = vpow.pop %v1259
        %v1261 = vsel %vm1041, %v1260, 0.0
        %1262 = vadd.xlane.f32.xlu0 %v1261
        %v1263 = vpop.xlane.xlu0 %1262
        %v1264 = vrcp.pop %v1263
        %v1265 = vmul.f32 %v1260, %v1264
        %v1266 = vpack.c.bf16 %v1265, %v1265
        %1267 = vrot.lane.b32.xlu0 %v1038, 40
        %v1268 = vpop.permute.xlu0 %1267
        %v1270 = vsel %vm1041, %v1266, 0
        %v1273 = vsel %vm1080, %v1268, 0
        %1275 = vmatpush.bf16.msra.mxu0 0
        %1276 = vmatpush.bf16.msra.mxu0 0
        %1277 = vmatpush.bf16.msra.mxu0 0
        %1278 = vmatpush.bf16.msra.mxu0 0
        %1279 = vmatpush.bf16.msra.mxu0 0
        %1280 = vmatpush.bf16.msra.mxu0 0
        %1281 = vmatpush.bf16.msra.mxu0 0
        %1282 = vmatpush.bf16.msra.mxu0 %v1273
        %1283 = vmatmul.bf16.gmra.mxu0 %v1270
        %v1284 = vpop.f32.mrf.mxu0
        %v1285 = vadd.f32 0.0, %v1284
        %v1286 = vpop.f32.mrf.mxu0
        %1287 = vdwg.mxu0
        %v1288 = vpack.c.bf16 %v1285, %v1285
        %1290 = vrot.lane.b32.xlu0 %v1288, 24
        %v1291 = vpop.permute.xlu0 %1290
        %vm1293 = vcmask 257216
        %1294 = vst.msk [vmem:[#allocation3] sm:$0xf] %vm1293, %v1291
        %s1295 = scalar_lea.vmem %s740, 1 [#allocation10]
        %v1296 = vld [vmem:[%s1295] sm:$0x1]
        %v1298 = vperm.slane %v1296, 0
        %v1301 = vunpack.c.l.b16 %v1031
        %v1302 = vpack.c.b16 %v1301, %v1301
        %1303 = vrot.lane.b32.xlu0 %v1302, 96
        %v1304 = vpop.permute.xlu0 %1303
        %v1306 = vsel %vm1041, %v1031, 0
        %v1309 = vsel %vm1041, %v1304, 0
        %1311 = vmatpush.bf16.xpose.msra.mxu0 0
        %1312 = vmatpush.bf16.xpose.msra.mxu0 0
        %1313 = vmatpush.bf16.xpose.msra.mxu0 0
        %1314 = vmatpush.bf16.xpose.msra.mxu0 0
        %1315 = vmatpush.bf16.xpose.msra.mxu0 0
        %1316 = vmatpush.bf16.xpose.msra.mxu0 0
        %1317 = vmatpush.bf16.xpose.msra.mxu0 0
        %1318 = vmatpush.bf16.xpose.msra.mxu0 %v1309
        %1319 = vmatmul.bf16.gmra.mxu0 %v1306
        %v1320 = vpop.f32.mrf.mxu0
        %v1321 = vadd.f32 0.0, %v1320
        %v1322 = vpop.f32.mrf.mxu0
        %1323 = vdwg.mxu0
        %v1324 = vmul.f32 %v1321, 0.35355338
        %v1325 = vadd.f32 %v1324, %v1298
        %v1326 = vsel %vm1041, %v1325, -inf
        %1327 = vmax.xlane.f32.xlu0 %v1326
        %v1328 = vpop.xlane.xlu0 %1327
        %v1329 = vsub.f32 %v1325, %v1328
        %v1330 = vmul.f32 %v1329, 1.442695
        %v1331 = vpow.pop %v1330
        %v1332 = vsel %vm1041, %v1331, 0.0
        %1333 = vadd.xlane.f32.xlu0 %v1332
        %v1334 = vpop.xlane.xlu0 %1333
        %v1335 = vrcp.pop %v1334
        %v1336 = vmul.f32 %v1331, %v1335
        %v1337 = vpack.c.bf16 %v1336, %v1336
        %1338 = vrot.lane.b32.xlu0 %v1302, 64
        %v1339 = vpop.permute.xlu0 %1338
        %v1341 = vsel %vm1041, %v1337, 0
        %v1344 = vsel %vm1080, %v1339, 0
        %1346 = vmatpush.bf16.msra.mxu0 0
        %1347 = vmatpush.bf16.msra.mxu0 0
        %1348 = vmatpush.bf16.msra.mxu0 0
        %1349 = vmatpush.bf16.msra.mxu0 0
        %1350 = vmatpush.bf16.msra.mxu0 0
        %1351 = vmatpush.bf16.msra.mxu0 0
        %1352 = vmatpush.bf16.msra.mxu0 0
        %1353 = vmatpush.bf16.msra.mxu0 %v1344
        %1354 = vmatmul.bf16.gmra.mxu0 %v1341
        %v1355 = vpop.f32.mrf.mxu0
        %v1356 = vadd.f32 0.0, %v1355
        %v1357 = vpop.f32.mrf.mxu0
        %1358 = vdwg.mxu0
        %v1359 = vpack.c.bf16 %v1356, %v1356
        %1360 = vst.msk [vmem:[#allocation3 + $0x4] sm:$0xf] %vm1098, %v1359
        %1361 = vrot.lane.b32.xlu0 %v1302, 120
        %v1362 = vpop.permute.xlu0 %1361
        %1363 = vrot.lane.b32.xlu0 %v1302, 88
        %v1364 = vpop.permute.xlu0 %1363
        %v1366 = vsel %vm1041, %v1362, 0
        %v1369 = vsel %vm1041, %v1364, 0
        %1371 = vmatpush.bf16.xpose.msra.mxu0 0
        %1372 = vmatpush.bf16.xpose.msra.mxu0 0
        %1373 = vmatpush.bf16.xpose.msra.mxu0 0
        %1374 = vmatpush.bf16.xpose.msra.mxu0 0
        %1375 = vmatpush.bf16.xpose.msra.mxu0 0
        %1376 = vmatpush.bf16.xpose.msra.mxu0 0
        %1377 = vmatpush.bf16.xpose.msra.mxu0 0
        %1378 = vmatpush.bf16.xpose.msra.mxu0 %v1369
        %1379 = vmatmul.bf16.gmra.mxu0 %v1366
        %v1380 = vpop.f32.mrf.mxu0
        %v1381 = vadd.f32 0.0, %v1380
        %v1382 = vpop.f32.mrf.mxu0
        %1383 = vdwg.mxu0
        %v1384 = vmul.f32 %v1381, 0.35355338
        %v1385 = vadd.f32 %v1384, %v1298
        %v1386 = vsel %vm1041, %v1385, -inf
        %1387 = vmax.xlane.f32.xlu0 %v1386
        %v1388 = vpop.xlane.xlu0 %1387
        %v1389 = vsub.f32 %v1385, %v1388
        %v1390 = vmul.f32 %v1389, 1.442695
        %v1391 = vpow.pop %v1390
        %v1392 = vsel %vm1041, %v1391, 0.0
        %1393 = vadd.xlane.f32.xlu0 %v1392
        %v1394 = vpop.xlane.xlu0 %1393
        %v1395 = vrcp.pop %v1394
        %v1396 = vmul.f32 %v1391, %v1395
        %v1397 = vpack.c.bf16 %v1396, %v1396
        %1398 = vrot.lane.b32.xlu0 %v1302, 56
        %v1399 = vpop.permute.xlu0 %1398
        %v1401 = vsel %vm1041, %v1397, 0
        %v1404 = vsel %vm1080, %v1399, 0
        %1406 = vmatpush.bf16.msra.mxu0 0
        %1407 = vmatpush.bf16.msra.mxu0 0
        %1408 = vmatpush.bf16.msra.mxu0 0
        %1409 = vmatpush.bf16.msra.mxu0 0
        %1410 = vmatpush.bf16.msra.mxu0 0
        %1411 = vmatpush.bf16.msra.mxu0 0
        %1412 = vmatpush.bf16.msra.mxu0 0
        %1413 = vmatpush.bf16.msra.mxu0 %v1404
        %1414 = vmatmul.bf16.gmra.mxu0 %v1401
        %v1415 = vpop.f32.mrf.mxu0
        %v1416 = vadd.f32 0.0, %v1415
        %v1417 = vpop.f32.mrf.mxu0
        %1418 = vdwg.mxu0
        %v1419 = vpack.c.bf16 %v1416, %v1416
        %1421 = vrot.lane.b32.xlu0 %v1419, 8
        %v1422 = vpop.permute.xlu0 %1421
        %1424 = vst.msk [vmem:[#allocation3 + $0x4] sm:$0xf] %vm1163, %v1422
        %1425 = vrot.lane.b32.xlu0 %v1302, 112
        %v1426 = vpop.permute.xlu0 %1425
        %1427 = vrot.lane.b32.xlu0 %v1302, 80
        %v1428 = vpop.permute.xlu0 %1427
        %v1430 = vsel %vm1041, %v1426, 0
        %v1433 = vsel %vm1041, %v1428, 0
        %1435 = vmatpush.bf16.xpose.msra.mxu0 0
        %1436 = vmatpush.bf16.xpose.msra.mxu0 0
        %1437 = vmatpush.bf16.xpose.msra.mxu0 0
        %1438 = vmatpush.bf16.xpose.msra.mxu0 0
        %1439 = vmatpush.bf16.xpose.msra.mxu0 0
        %1440 = vmatpush.bf16.xpose.msra.mxu0 0
        %1441 = vmatpush.bf16.xpose.msra.mxu0 0
        %1442 = vmatpush.bf16.xpose.msra.mxu0 %v1433
        %1443 = vmatmul.bf16.gmra.mxu0 %v1430
        %v1444 = vpop.f32.mrf.mxu0
        %v1445 = vadd.f32 0.0, %v1444
        %v1446 = vpop.f32.mrf.mxu0
        %1447 = vdwg.mxu0
        %v1448 = vmul.f32 %v1445, 0.35355338
        %v1449 = vadd.f32 %v1448, %v1298
        %v1450 = vsel %vm1041, %v1449, -inf
        %1451 = vmax.xlane.f32.xlu0 %v1450
        %v1452 = vpop.xlane.xlu0 %1451
        %v1453 = vsub.f32 %v1449, %v1452
        %v1454 = vmul.f32 %v1453, 1.442695
        %v1455 = vpow.pop %v1454
        %v1456 = vsel %vm1041, %v1455, 0.0
        %1457 = vadd.xlane.f32.xlu0 %v1456
        %v1458 = vpop.xlane.xlu0 %1457
        %v1459 = vrcp.pop %v1458
        %v1460 = vmul.f32 %v1455, %v1459
        %v1461 = vpack.c.bf16 %v1460, %v1460
        %1462 = vrot.lane.b32.xlu0 %v1302, 48
        %v1463 = vpop.permute.xlu0 %1462
        %v1465 = vsel %vm1041, %v1461, 0
        %v1468 = vsel %vm1080, %v1463, 0
        %1470 = vmatpush.bf16.msra.mxu0 0
        %1471 = vmatpush.bf16.msra.mxu0 0
        %1472 = vmatpush.bf16.msra.mxu0 0
        %1473 = vmatpush.bf16.msra.mxu0 0
        %1474 = vmatpush.bf16.msra.mxu0 0
        %1475 = vmatpush.bf16.msra.mxu0 0
        %1476 = vmatpush.bf16.msra.mxu0 0
        %1477 = vmatpush.bf16.msra.mxu0 %v1468
        %1478 = vmatmul.bf16.gmra.mxu0 %v1465
        %v1479 = vpop.f32.mrf.mxu0
        %v1480 = vadd.f32 0.0, %v1479
        %v1481 = vpop.f32.mrf.mxu0
        %1482 = vdwg.mxu0
        %v1483 = vpack.c.bf16 %v1480, %v1480
        %1485 = vrot.lane.b32.xlu0 %v1483, 16
        %v1486 = vpop.permute.xlu0 %1485
        %1488 = vst.msk [vmem:[#allocation3 + $0x4] sm:$0xf] %vm1228, %v1486
        %1489 = vrot.lane.b32.xlu0 %v1302, 104
        %v1490 = vpop.permute.xlu0 %1489
        %1491 = vrot.lane.b32.xlu0 %v1302, 72
        %v1492 = vpop.permute.xlu0 %1491
        %v1494 = vsel %vm1041, %v1490, 0
        %v1497 = vsel %vm1041, %v1492, 0
        %1499 = vmatpush.bf16.xpose.msra.mxu0 0
        %1500 = vmatpush.bf16.xpose.msra.mxu0 0
        %1501 = vmatpush.bf16.xpose.msra.mxu0 0
        %1502 = vmatpush.bf16.xpose.msra.mxu0 0
        %1503 = vmatpush.bf16.xpose.msra.mxu0 0
        %1504 = vmatpush.bf16.xpose.msra.mxu0 0
        %1505 = vmatpush.bf16.xpose.msra.mxu0 0
        %1506 = vmatpush.bf16.xpose.msra.mxu0 %v1497
        %1507 = vmatmul.bf16.gmra.mxu0 %v1494
        %v1508 = vpop.f32.mrf.mxu0
        %v1509 = vadd.f32 0.0, %v1508
        %v1510 = vpop.f32.mrf.mxu0
        %1511 = vdwg.mxu0
        %v1512 = vmul.f32 %v1509, 0.35355338
        %v1513 = vadd.f32 %v1512, %v1298
        %v1514 = vsel %vm1041, %v1513, -inf
        %1515 = vmax.xlane.f32.xlu0 %v1514
        %v1516 = vpop.xlane.xlu0 %1515
        %v1517 = vsub.f32 %v1513, %v1516
        %v1518 = vmul.f32 %v1517, 1.442695
        %v1519 = vpow.pop %v1518
        %v1520 = vsel %vm1041, %v1519, 0.0
        %1521 = vadd.xlane.f32.xlu0 %v1520
        %v1522 = vpop.xlane.xlu0 %1521
        %v1523 = vrcp.pop %v1522
        %v1524 = vmul.f32 %v1519, %v1523
        %v1525 = vpack.c.bf16 %v1524, %v1524
        %1526 = vrot.lane.b32.xlu0 %v1302, 40
        %v1527 = vpop.permute.xlu0 %1526
        %v1529 = vsel %vm1041, %v1525, 0
        %v1532 = vsel %vm1080, %v1527, 0
        %1534 = vmatpush.bf16.msra.mxu0 0
        %1535 = vmatpush.bf16.msra.mxu0 0
        %1536 = vmatpush.bf16.msra.mxu0 0
        %1537 = vmatpush.bf16.msra.mxu0 0
        %1538 = vmatpush.bf16.msra.mxu0 0
        %1539 = vmatpush.bf16.msra.mxu0 0
        %1540 = vmatpush.bf16.msra.mxu0 0
        %1541 = vmatpush.bf16.msra.mxu0 %v1532
        %1542 = vmatmul.bf16.gmra.mxu0 %v1529
        %v1543 = vpop.f32.mrf.mxu0
        %v1544 = vadd.f32 0.0, %v1543
        %v1545 = vpop.f32.mrf.mxu0
        %1546 = vdwg.mxu0
        %v1547 = vpack.c.bf16 %v1544, %v1544
        %1549 = vrot.lane.b32.xlu0 %v1547, 24
        %v1550 = vpop.permute.xlu0 %1549
        %1552 = vst.msk [vmem:[#allocation3 + $0x4] sm:$0xf] %vm1293, %v1550
        %v1553 = vld [vmem:[#allocation3] sm:$0xf]
        %v1554 = vld [vmem:[#allocation3 + $0x4] sm:$0xf]
        %v1555 = vld [vmem:[%s882] sm:$0xf]
        %v1556 = vld [vmem:[%s882 + $0x4] sm:$0xf]
        %v1557 = vld [vmem:[%s882 + $0x8] sm:$0xf]
        %v1558 = vld [vmem:[%s882 + $0xc] sm:$0xf]
        %v1559 = vld [vmem:[%s885] sm:$0x1]
        %v1561 = vperm.slane %v1559, 0
        %v1565 = vunpack.c.l.b16 %v1553
        %v1566 = vunpack.c.l.b16 %v1554
        %v1567 = vpack.c.b16 %v1566, %v1565
        %v1572 = vunpack.c.l.b16 %v1555
        %v1573 = vunpack.c.l.b16 %v1556
        %v1574 = vunpack.c.l.b16 %v1557
        %v1575 = vunpack.c.l.b16 %v1558
        %v1576 = vpack.c.b16 %v1573, %v1572
        %v1577 = vpack.c.b16 %v1575, %v1574
        %v1581 = vsel %vm1012, %v1567, 0
        %1583 = vmatpush.bf16.msra.mxu0 0
        %1584 = vmatpush.bf16.msra.mxu0 0
        %1585 = vmatpush.bf16.msra.mxu0 0
        %1586 = vmatpush.bf16.msra.mxu0 0
        %1587 = vmatpush.bf16.msra.mxu0 0
        %1588 = vmatpush.bf16.msra.mxu0 0
        %1589 = vmatpush.bf16.msra.mxu0 %v1577
        %1590 = vmatpush.bf16.msra.mxu0 %v1576
        %1591 = vmatmul.bf16.gmra.mxu0 %v1581
        %v1592 = vpop.f32.mrf.mxu0
        %v1593 = vadd.f32 %v1561, %v1592
        %v1594 = vpop.f32.mrf.mxu0
        %v1595 = vadd.f32 %v1561, %v1594
        %1596 = vdwg.mxu0
        %v1597 = vadd.f32 %v1593, %v989
        %v1598 = vadd.f32 %v1595, %v990
        %v1599 = vld [vmem:[%s888] sm:$0x1]
        %v1600 = vld [vmem:[%s891] sm:$0x1]
        %v1601 = vsel %vm1012, %v1597, 0.0
        %1602 = vadd.xlane.f32.xlu0 %v1601
        %v1603 = vpop.xlane.xlu0 %1602
        %v1604 = vsel %vm1012, %v1598, 0.0
        %1605 = vadd.xlane.f32.xlu0 %v1604
        %v1606 = vpop.xlane.xlu0 %1605
        %v1607 = vrcp.pop 32.0
        %v1608 = vmul.f32 32.0, %v1607
        %v1609 = vsub.f32 1.0, %v1608
        %v1610 = vmul.f32 %v1607, %v1609
        %v1611 = vadd.f32 %v1607, %v1610
        %vm1612 = vweird.f32 %v1607
        %v1613 = vsel %vm1612, %v1607, %v1611
        %v1614 = vmul.f32 %v1603, %v1613
        %v1615 = vmul.f32 %v1606, %v1613
        %v1616 = vsub.f32 %v1597, %v1614
        %v1617 = vsub.f32 %v1598, %v1615
        %v1618 = vmul.f32 %v1616, %v1616
        %v1619 = vmul.f32 %v1617, %v1617
        %v1620 = vsel %vm1012, %v1618, 0.0
        %1621 = vadd.xlane.f32.xlu0 %v1620
        %v1622 = vpop.xlane.xlu0 %1621
        %v1623 = vsel %vm1012, %v1619, 0.0
        %1624 = vadd.xlane.f32.xlu0 %v1623
        %v1625 = vpop.xlane.xlu0 %1624
        %v1626 = vmul.f32 %v1622, %v1613
        %v1627 = vmul.f32 %v1625, %v1613
        %v1628 = vadd.f32 %v1626, 1e-12
        %v1629 = vadd.f32 %v1627, 1e-12
        %v1630 = vrsqrt.pop %v1628
        %v1631 = vmul.f32 %v1630, %v1628
        %v1632 = vmul.f32 %v1631, %v1630
        %v1633 = vmul.f32 0.5, %v1632
        %v1634 = vsub.f32 1.5, %v1633
        %v1635 = vmul.f32 %v1630, %v1634
        %vm1636 = vweird.f32 %v1628
        %vm1637 = vweird.f32 %v1630
        %vm1638 = vmor %vm1636, %vm1637
        %v1639 = vsel %vm1638, %v1630, %v1635
        %v1640 = vrsqrt.pop %v1629
        %v1641 = vmul.f32 %v1640, %v1629
        %v1642 = vmul.f32 %v1641, %v1640
        %v1643 = vmul.f32 0.5, %v1642
        %v1644 = vsub.f32 1.5, %v1643
        %v1645 = vmul.f32 %v1640, %v1644
        %vm1646 = vweird.f32 %v1629
        %vm1647 = vweird.f32 %v1640
        %vm1648 = vmor %vm1646, %vm1647
        %v1649 = vsel %vm1648, %v1640, %v1645
        %v1650 = vmul.f32 %v1616, %v1639
        %v1651 = vmul.f32 %v1617, %v1649
        %v1653 = vperm.slane %v1599, 0
        %v1655 = vmul.f32 %v1653, %v1650
        %v1656 = vmul.f32 %v1653, %v1651
        %v1658 = vperm.slane %v1600, 0
        %v1660 = vadd.f32 %v1655, %v1658
        %v1661 = vadd.f32 %v1656, %v1658
        %v1662 = vpack.c.bf16 %v1661, %v1660
        %v1663 = vld [vmem:[%s750] sm:$0xf]
        %v1664 = vld [vmem:[%s750 + $0x4] sm:$0xf]
        %v1665 = vld [vmem:[%s750 + $0x8] sm:$0xf]
        %v1666 = vld [vmem:[%s750 + $0xc] sm:$0xf]
        %v1667 = vld [vmem:[%s894] sm:$0x1]
        %v1669 = vperm.slane %v1667, 0
        %v1675 = vunpack.c.l.b16 %v1663
        %v1676 = vunpack.c.l.b16 %v1664
        %v1677 = vunpack.c.l.b16 %v1665
        %v1678 = vunpack.c.l.b16 %v1666
        %v1679 = vpack.c.b16 %v1676, %v1675
        %v1680 = vpack.c.b16 %v1678, %v1677
        %v1684 = vsel %vm1012, %v1662, 0
        %1686 = vmatpush.bf16.msra.mxu0 0
        %1687 = vmatpush.bf16.msra.mxu0 0
        %1688 = vmatpush.bf16.msra.mxu0 0
        %1689 = vmatpush.bf16.msra.mxu0 0
        %1690 = vmatpush.bf16.msra.mxu0 0
        %1691 = vmatpush.bf16.msra.mxu0 0
        %1692 = vmatpush.bf16.msra.mxu0 %v1680
        %1693 = vmatpush.bf16.msra.mxu0 %v1679
        %1694 = vmatmul.bf16.gmra.mxu0 %v1684
        %v1695 = vpop.f32.mrf.mxu0
        %v1696 = vadd.f32 %v1669, %v1695
        %v1697 = vpop.f32.mrf.mxu0
        %v1698 = vadd.f32 %v1669, %v1697
        %1699 = vdwg.mxu0
        %v1700 = vmul.f32 %v1696, 0.5
        %v1701 = vmul.f32 %v1698, 0.5
        %v1702 = vmul.f32 %v1696, 0.044715
        %v1703 = vmul.f32 %v1698, 0.044715
        %v1704 = vmul.f32 %v1702, %v1696
        %v1705 = vmul.f32 %v1703, %v1698
        %v1706 = vmul.f32 %v1704, %v1696
        %v1707 = vmul.f32 %v1705, %v1698
        %v1708 = vadd.f32 %v1696, %v1706
        %v1709 = vadd.f32 %v1698, %v1707
        %v1710 = vmul.f32 %v1708, 0.7978846
        %v1711 = vmul.f32 %v1709, 0.7978846
        %v1712 = vtanh.pop %v1710
        %v1713 = vtanh.pop %v1711
        %v1714 = vadd.f32 %v1712, 1.0
        %v1715 = vadd.f32 %v1713, 1.0
        %v1716 = vmul.f32 %v1700, %v1714
        %v1717 = vmul.f32 %v1701, %v1715
        %v1718 = vpack.c.bf16 %v1717, %v1716
        %v1719 = vld [vmem:[%s899] sm:$0xf]
        %v1720 = vld [vmem:[%s899 + $0x4] sm:$0xf]
        %v1721 = vld [vmem:[%s899 + $0x8] sm:$0xf]
        %v1722 = vld [vmem:[%s899 + $0xc] sm:$0xf]
        %v1723 = vld [vmem:[%s899 + $0x10] sm:$0xf]
        %v1724 = vld [vmem:[%s899 + $0x14] sm:$0xf]
        %v1725 = vld [vmem:[%s899 + $0x18] sm:$0xf]
        %v1726 = vld [vmem:[%s899 + $0x1c] sm:$0xf]
        %v1727 = vld [vmem:[%s902] sm:$0x1]
        %v1729 = vperm.slane %v1727, 0
        %v1739 = vunpack.c.l.b16 %v1719
        %v1740 = vunpack.c.l.b16 %v1720
        %v1741 = vunpack.c.l.b16 %v1721
        %v1742 = vunpack.c.l.b16 %v1722
        %v1743 = vunpack.c.l.b16 %v1723
        %v1744 = vunpack.c.l.b16 %v1724
        %v1745 = vunpack.c.l.b16 %v1725
        %v1746 = vunpack.c.l.b16 %v1726
        %v1747 = vpack.c.b16 %v1740, %v1739
        %v1748 = vpack.c.b16 %v1742, %v1741
        %v1749 = vpack.c.b16 %v1744, %v1743
        %v1750 = vpack.c.b16 %v1746, %v1745
        %vm1755 = vcmask 523264
        %v1757 = vsel %vm1755, %v1718, 0
        %1759 = vmatpush.bf16.msra.mxu0 0
        %1760 = vmatpush.bf16.msra.mxu0 0
        %1761 = vmatpush.bf16.msra.mxu0 0
        %1762 = vmatpush.bf16.msra.mxu0 0
        %1763 = vmatpush.bf16.msra.mxu0 %v1750
        %1764 = vmatpush.bf16.msra.mxu0 %v1749
        %1765 = vmatpush.bf16.msra.mxu0 %v1748
        %1766 = vmatpush.bf16.msra.mxu0 %v1747
        %1767 = vmatmul.bf16.gmra.mxu0 %v1757
        %v1768 = vpop.f32.mrf.mxu0
        %v1769 = vadd.f32 %v1729, %v1768
        %v1770 = vpop.f32.mrf.mxu0
        %v1771 = vadd.f32 %v1729, %v1770
        %1772 = vdwg.mxu0
        %v1773 = vadd.f32 %v1769, %v1660
        %v1774 = vadd.f32 %v1771, %v1661
        %v1775 = vld [vmem:[%s905] sm:$0x1]
        %v1776 = vld [vmem:[%s759] sm:$0x1]
        %v1777 = vsel %vm1012, %v1773, 0.0
        %1778 = vadd.xlane.f32.xlu0 %v1777
        %v1779 = vpop.xlane.xlu0 %1778
        %v1780 = vsel %vm1012, %v1774, 0.0
        %1781 = vadd.xlane.f32.xlu0 %v1780
        %v1782 = vpop.xlane.xlu0 %1781
        %v1783 = vmul.f32 %v1779, %v1613
        %v1784 = vmul.f32 %v1782, %v1613
        %v1785 = vsub.f32 %v1773, %v1783
        %v1786 = vsub.f32 %v1774, %v1784
        %v1787 = vmul.f32 %v1785, %v1785
        %v1788 = vmul.f32 %v1786, %v1786
        %v1789 = vsel %vm1012, %v1787, 0.0
        %1790 = vadd.xlane.f32.xlu0 %v1789
        %v1791 = vpop.xlane.xlu0 %1790
        %v1792 = vsel %vm1012, %v1788, 0.0
        %1793 = vadd.xlane.f32.xlu0 %v1792
        %v1794 = vpop.xlane.xlu0 %1793
        %v1795 = vmul.f32 %v1791, %v1613
        %v1796 = vmul.f32 %v1794, %v1613
        %v1797 = vadd.f32 %v1795, 1e-12
        %v1798 = vadd.f32 %v1796, 1e-12
        %v1799 = vrsqrt.pop %v1797
        %v1800 = vmul.f32 %v1799, %v1797
        %v1801 = vmul.f32 %v1800, %v1799
        %v1802 = vmul.f32 0.5, %v1801
        %v1803 = vsub.f32 1.5, %v1802
        %v1804 = vmul.f32 %v1799, %v1803
        %vm1805 = vweird.f32 %v1797
        %vm1806 = vweird.f32 %v1799
        %vm1807 = vmor %vm1805, %vm1806
        %v1808 = vsel %vm1807, %v1799, %v1804
        %v1809 = vrsqrt.pop %v1798
        %v1810 = vmul.f32 %v1809, %v1798
        %v1811 = vmul.f32 %v1810, %v1809
        %v1812 = vmul.f32 0.5, %v1811
        %v1813 = vsub.f32 1.5, %v1812
        %v1814 = vmul.f32 %v1809, %v1813
        %vm1815 = vweird.f32 %v1798
        %vm1816 = vweird.f32 %v1809
        %vm1817 = vmor %vm1815, %vm1816
        %v1818 = vsel %vm1817, %v1809, %v1814
        %v1819 = vmul.f32 %v1785, %v1808
        %v1820 = vmul.f32 %v1786, %v1818
        %v1822 = vperm.slane %v1775, 0
        %v1824 = vmul.f32 %v1822, %v1819
        %v1825 = vmul.f32 %v1822, %v1820
        %v1827 = vperm.slane %v1776, 0
        %v1829 = vadd.f32 %v1824, %v1827
        %v1830 = vadd.f32 %v1825, %v1827
        %1831 = vst.msk [vmem:[#allocation2] sm:$0xff] %vm1012, %v1829
        %1832 = vst.msk [vmem:[#allocation2 + $0x8] sm:$0xff] %vm1012, %v1830
        %p1833 = scmp.eq.s32.totalorder %s45, 1
        // Predicated region
        $region121: #{tpu_custom_call.1} parent=91 // pred_check
          %p1834 = pneg %p1833
        $region122: #{tpu_custom_call.1} parent=91 // pred_check_branch
          %1836 = sbr.rel (%p1834) target = $region124
        $region123: #{tpu_custom_call.1} parent=91 // pred_region
          %1837 = vst.msk [vmem:[%s862] sm:$0xff] %vm1012, %v1829
          %1838 = vst.msk [vmem:[%s862 + $0x8] sm:$0xff] %vm1012, %v1830
        $region124: #{tpu_custom_call.1} parent=91 // pred_fallthru
          _
        %s1839 = sand.u32 %s508, 1
        %s1840 = scalar_lea.sflag [#allocation6], %s1839
        %s1841 = sand.u32 %s508, 1
        %s1842 = smul.addr %s1841, 16
        %s1843 = scalar_lea.vmem [#allocation15], %s1842
        // Predicated region
        $region125: #{tpu_custom_call.1} parent=91 // pred_check
          %p1844 = pneg %p518
        $region126: #{tpu_custom_call.1} parent=91 // pred_check_branch
          %1846 = sbr.rel (%p1844) target = $region128
        $region127: #{tpu_custom_call.1} parent=91 // pred_region
          %s1847 = smul.u32 2, %s44
          %1849 = vsyncadd %s1840, 0
          %s1850 = smul.addr %s1847, 8
          %s1851 = scalar_lea.hbm %s18, %s1850
          %s1852 = sshll.u32 %s1843, 4
          %s1853 = int_to_ptr.vmem [resolvable:$true] %s1852
          %s1854 = sshll.u32 %s1851, 4
          %s1855 = int_to_ptr.hbm [resolvable:$true] %s1854
          %1860 = dma.vmem_to_hbm [thread:$0]  %s1853, 256, %s1855, %s1840, 128, 128, 8
        $region128: #{tpu_custom_call.1} parent=91 // pred_fallthru
          _
      $region92: #{tpu_custom_call.1} parent=5 // pred_fallthru
        _
      %p1861 = scmp.le.s32.totalorder 2, %s35
      // Predicated region
      $region129: #{tpu_custom_call.1} parent=5 // pred_check
        %p1862 = pneg %p1861
      $region130: #{tpu_custom_call.1} parent=5 // pred_check_branch
        %1864 = sbr.rel (%p1862) target = $region132
      $region131: #{tpu_custom_call.1} parent=5 // pred_region
        %s1865 = ssub.s32 %s35, 2
        // Predicated region
        $region133: #{tpu_custom_call.1} parent=131 // pred_check
          %p1866 = pneg %p524
        $region134: #{tpu_custom_call.1} parent=131 // pred_check_branch
          %1868 = sbr.rel (%p1866) target = $region136
        $region135: #{tpu_custom_call.1} parent=131 // pred_region
          %s1869 = sand.u32 %s509, 1
          %s1870 = scalar_lea.sflag [#allocation6], %s1869
          %s1871 = sand.u32 %s509, 1
          %s1872 = smul.addr %s1871, 16
          %s1873 = scalar_lea.vmem [#allocation15], %s1872
          %1875 = dma.done %s1870, 256
        $region136: #{tpu_custom_call.1} parent=131 // pred_fallthru
          _
      $region132: #{tpu_custom_call.1} parent=5 // pred_fallthru
        _
    $region6: #{tpu_custom_call.1} parent=1 // loop_footer
      %s39 = sadd.s32 1, %s35
    $region7: #{tpu_custom_call.1} parent=1 // loop_footer_branch
      %34 = sbr.rel target = $region3
    $region8: #{tpu_custom_call.1} parent=1 // loop_exit
      _
    %1876 = vsyncpa [#allocation5], 1
    %s1877 = scalar_lea.sflag [#allocation5], 1
    %1878 = vsyncpa %s1877, 1
    %1879 = vsyncpa [#allocation8], 1
    %1880 = vsyncpa [#allocation11], 1
    %s1881 = scalar_lea.sflag [#allocation11], 1
    %1882 = vsyncpa %s1881, 1
    %1883 = vsyncpa [#allocation14], 1
    %s1884 = scalar_lea.sflag [#allocation14], 1
    %1885 = vsyncpa %s1884, 1
    %1886 = vsyncpa [#allocation6], 1
    %s1887 = scalar_lea.sflag [#allocation6], 1
    %1888 = vsyncpa %s1887, 1

</llo_original>
